<compile_context>
chip_gen: v7x
topology: tpu7x:2x2x1
jax: 0.10.0
libtpu: 0.0.40
codegen_flags: <defaults>
</compile_context>

<pallas_src>
import numpy as np
import jax
import jax.numpy as jnp
from jax import lax
from jax.experimental import pallas as pl
from jax.experimental.pallas import tpu as pltpu


# ----------------------------------------------------------------------------
# Static problem sizes (synthetic submodules)
# ----------------------------------------------------------------------------
T, FA, C, H, W = 8, 32, 3, 16, 16          # frames per chunk, mel bins, video C/H/W
KH = KW = 3
STRIDE = 2
HO = (H - KH) // STRIDE + 1                # 7
WO = (W - KW) // STRIDE + 1                # 7
COUT = 16                                  # conv output channels
NPATCH = HO * WO                           # 49 spatial positions per frame
TNP = T * NPATCH                           # 392 im2col rows per chunk
KC = KH * KW * C                           # 27 im2col columns
KAUG = KC + 1                              # +1 ones column carrying the conv bias
D = 32                                     # model hidden dim
VOCAB = 48                                 # synthetic sentencepiece vocab
VPAD = 128                                 # vocab padded to one full lane vreg
WROWS = FA + COUT + 2 * D                  # packed weight slab rows: Wa|Wv|Wf_a|Wf_v
BLANK = 0
NEG_INF = -1e30

_CHARS = ["<b>", "▁"] + [chr(ord("a") + (i % 26)) for i in range(VOCAB - 2)]


# ----------------------------------------------------------------------------
# Fused Pallas kernel: whole device-side pipeline, one chunk per grid step
# ----------------------------------------------------------------------------
def _fused_avsr_kernel(audio_ref, patch_ref, wc_ref, sel_ref, wmat_ref, wj_ref,
                       bias_ref, tok_ref):
    f32, bf16 = jnp.float32, jnp.bfloat16

    # Static slices of the packed parameter slabs (weights bf16, biases f32).
    wa = wmat_ref[0:FA, :]                               # (32, 32)
    wv = wmat_ref[FA:FA + COUT, :]                       # (16, 32)
    wf_a = wmat_ref[FA + COUT:FA + COUT + D, :]          # (32, 32) audio half of Wf
    wf_v = wmat_ref[FA + COUT + D:WROWS, :]              # (32, 32) video half of Wf
    ba = bias_ref[0:1, 0:D]
    bv = bias_ref[1:2, 0:D]
    bf = bias_ref[2:3, 0:D]
    bj = bias_ref[3:4, :]                                # (1, 128), -1e30 on padding

    # ---- audio frontend: chunk-local per-feature mean/var norm (f32 on VPU),
    #      then linear + ReLU on the MXU in bf16 with f32 accumulation ----
    a = audio_ref[...]                                   # (T, FA) f32
    mu = jnp.mean(a, axis=0, keepdims=True)
    var = jnp.mean((a - mu) ** 2, axis=0, keepdims=True)
    an = (a - mu) * lax.rsqrt(var + 1e-6)
    a_feat = jnp.maximum(
        jnp.dot(an.astype(bf16), wa, preferred_element_type=f32) + ba, 0.0)

    # ---- video frontend: im2col patches @ compact folded conv weight (bias via
    #      the ones column), ReLU, spatial mean pool as a selector matmul,
    #      linear + ReLU ----
    conv = jnp.maximum(
        jnp.dot(patch_ref[...], wc_ref[...], preferred_element_type=f32), 0.0)   # (392,16)
    pooled = jnp.dot(sel_ref[...], conv.astype(bf16), preferred_element_type=f32)  # (T,16)
    v_feat = jnp.maximum(
        jnp.dot(pooled.astype(bf16), wv, preferred_element_type=f32) + bv, 0.0)    # (T, D)

    # ---- late fusion: concat([a_feat, v_feat]) @ Wf as a split matmul ----
    feats = (jnp.dot(a_feat.astype(bf16), wf_a, preferred_element_type=f32)
             + jnp.dot(v_feat.astype(bf16), wf_v, preferred_element_type=f32)
             + bf)                                                                  # (T, D)

    # ---- joint projection over the 128-padded vocab + greedy argmax (f32) ----
    logits = jnp.dot(feats.astype(bf16), wj_ref[...], preferred_element_type=f32) + bj
    m = jnp.max(logits, axis=-1, keepdims=True)
    idx = lax.broadcasted_iota(jnp.int32, logits.shape, 1)
    tok = jnp.min(jnp.where(logits >= m, idx, jnp.int32(VPAD)),
                  axis=-1, keepdims=True)                                           # (T, 1)
    # Lane-dense output: broadcast the token across the 128 lanes so the HBM
    # writeback is full, unmasked vreg stores.
    tok_ref[...] = jnp.broadcast_to(tok, (T, VPAD))


def _im2col(video):
    """(N, T, C, H, W) raw pixels -> (N, T*NPATCH, KAUG) bf16 im2col patches.

    Column order matches Wc: k = (dy*KW + dx)*C + c.  The last column is a
    constant 1 that carries the (normalization-folded) conv bias.  This is
    plain XLA work inside the same jit; it replaces the 2.4 MB dense-lowered
    conv weight of the previous version."""
    n = video.shape[0]
    cols = []
    for dy in range(KH):
        for dx in range(KW):
            cols.append(video[:, :, :, dy::STRIDE, dx::STRIDE][:, :, :, :HO, :WO])
    p = jnp.stack(cols, axis=2)                        # (N, T, 9, C, HO, WO)
    p = p.transpose(0, 1, 4, 5, 2, 3)                  # (N, T, HO, WO, 9, C)
    p = p.reshape(n, TNP, KC)
    ones = jnp.ones((n, TNP, 1), p.dtype)
    return jnp.concatenate([p, ones], axis=-1).astype(jnp.bfloat16)


def _fused_forward(audio, video, wc_aug, sel, wmat, wj, bias):
    n = audio.shape[0]
    patches = _im2col(video)
    return pl.pallas_call(
        _fused_avsr_kernel,
        out_shape=jax.ShapeDtypeStruct((n, T, VPAD), jnp.int32),
        grid=(n,),
        in_specs=[
            # per-chunk streams
            pl.BlockSpec((None, T, FA), lambda i: (i, 0, 0)),      # audio (f32)
            pl.BlockSpec((None, TNP, KAUG), lambda i: (i, 0, 0)),  # im2col patches (bf16)
            # constant index_map -> weights DMA'd once, VMEM-resident across chunks
            pl.BlockSpec((KAUG, COUT), lambda i: (0, 0)),          # folded conv (bf16)
            pl.BlockSpec((T, TNP), lambda i: (0, 0)),              # pool selector (bf16)
            pl.BlockSpec((WROWS, D), lambda i: (0, 0)),            # Wa|Wv|Wf slab (bf16)
            pl.BlockSpec((D, VPAD), lambda i: (0, 0)),             # padded joint W (bf16)
            pl.BlockSpec((4, VPAD), lambda i: (0, 0)),             # bias slab (f32)
        ],
        out_specs=pl.BlockSpec((None, T, VPAD), lambda i: (i, 0, 0)),
        compiler_params=pltpu.CompilerParams(
            dimension_semantics=("parallel",)),        # v7x: chunks split across 2 TCs
    )(audio, patches, wc_aug, sel, wmat, wj, bias)


_FUSED_FORWARD = jax.jit(_fused_forward)


# ----------------------------------------------------------------------------
# Synthetic submodules (deterministic parameters)
# ----------------------------------------------------------------------------
class Preprocessor:
    """Audio: per-feature mean/var normalization (runs inside the fused kernel,
    chunk-local).  Video: (x/255 - mean_c)/std_c expressed as x*a_c + b_c and
    folded into the compact conv weights (exact, since the conv is linear)."""

    def __init__(self, key):
        k1, k2 = jax.random.split(key)
        self.v_mean = 0.4 + 0.1 * jax.random.uniform(k1, (C,), jnp.float32)
        self.v_std = 0.2 + 0.1 * jax.random.uniform(k2, (C,), jnp.float32)

    def channel_affine(self):
        std = np.asarray(self.v_std, np.float64)
        mean = np.asarray(self.v_mean, np.float64)
        return 1.0 / (255.0 * std), -mean / std


class Model:
    """Audio frontend (linear+ReLU), video frontend (3x3/s2 conv + ReLU +
    spatial mean pool + linear), late fusion linear.  The conv keeps its
    compact (27+1, 16) weight; im2col happens in the jitted wrapper."""

    def __init__(self, key):
        ks = jax.random.split(key, 8)
        s = 0.05
        self.Wa = s * jax.random.normal(ks[0], (FA, D), jnp.float32)
        self.ba = s * jax.random.normal(ks[1], (1, D), jnp.float32)
        # conv weight in im2col order: [(dy,dx) outer, c inner] x Cout
        self.Wc = s * jax.random.normal(ks[2], (KC, COUT), jnp.float32)
        self.bc = s * jax.random.normal(ks[3], (1, COUT), jnp.float32)
        self.Wv = s * jax.random.normal(ks[4], (COUT, D), jnp.float32)
        self.bv = s * jax.random.normal(ks[5], (1, D), jnp.float32)
        self.Wf = s * jax.random.normal(ks[6], (2 * D, D), jnp.float32)
        self.bf = s * jax.random.normal(ks[7], (1, D), jnp.float32)

    def folded_conv(self, a_c, b_c):
        """(KAUG, COUT): conv weight with the per-channel video normalization
        (x*a + b) folded in; last row is the folded bias consumed by the ones
        column appended to the im2col patches.  Exact (conv is linear)."""
        Wc = np.asarray(self.Wc, np.float64)
        bc = np.asarray(self.bc, np.float64).reshape(-1)
        ch = np.tile(np.arange(C), KH * KW)            # channel of each im2col row
        Wc_f = a_c[ch][:, None] * Wc
        bc_f = b_c[ch] @ Wc + bc
        return jnp.asarray(np.concatenate([Wc_f, bc_f[None, :]], 0).astype(np.float32))

    @staticmethod
    def pool_selector():
        """(T, T*NPATCH) spatial mean pool expressed as a matmul (MXU work)."""
        sel = np.zeros((T, TNP), np.float32)
        for t in range(T):
            sel[t, t * NPATCH:(t + 1) * NPATCH] = 1.0 / NPATCH
        return jnp.asarray(sel)


class Decoder:
    """Greedy decode over a joint projection; the projection + argmax run inside
    the fused Pallas kernel, only hypothesis bookkeeping happens on host.
    TODO(synk): torchaudio's RNN-T beam search (beam_width=10, stateful
    prediction network) has no clean single-kernel Pallas equivalent; greedy
    per-frame argmax over the joint projection is used instead."""

    def __init__(self, key):
        k1, k2 = jax.random.split(key)
        self.Wj = 0.1 * jax.random.normal(k1, (D, VOCAB), jnp.float32)
        self.bj = 0.1 * jax.random.normal(k2, (1, VOCAB), jnp.float32)

    def padded_joint(self):
        # Pad vocab 48 -> 128 (one full lane vreg); padded columns get zero
        # weights and -1e30 bias (kept in f32) so they never win the argmax.
        Wj_pad = np.zeros((D, VPAD), np.float32)
        Wj_pad[:, :VOCAB] = np.asarray(self.Wj)
        bj_pad = np.full((1, VPAD), NEG_INF, np.float32)
        bj_pad[:, :VOCAB] = np.asarray(self.bj)
        return jnp.asarray(Wj_pad), jnp.asarray(bj_pad)

    def finalize(self, tokens_dev, lengths, beam_width=10, state=None, hypothesis=None):
        del beam_width, hypothesis
        toks = np.asarray(tokens_dev)[..., 0]          # ONE D2H sync for the whole stream
        tok_list = []
        for n, length in enumerate(lengths):
            tok_list.extend(int(t) for t in toks[n, : int(length)])
        hypotheses = [(tok_list, 0.0)]
        return hypotheses, tokens_dev                  # device array carried as state


class TokenProcessor:
    """Synthetic sentencepiece-style detokenizer (host-side string glue)."""

    def __call__(self, tokens, lstrip=True):
        out, prev = [], None
        for t in tokens:
            if t != BLANK and t != prev:
                out.append(_CHARS[t])
            prev = t
        text = "".join(out).replace("▁", " ")
        return text.lstrip() if lstrip else text


class InferencePipeline:
    """JAX/Pallas port of examples/tutorials/device_avsr.py::InferencePipeline.
    The whole preprocess -> model -> joint+argmax path is one jitted
    pallas_call with a chunk grid; only detokenization / hypothesis
    bookkeeping stays on host.  Accepts a single chunk (torch-forward style)
    or a batched stream of chunks (amortizes the weight DMA across the grid)."""

    def __init__(self, preprocessor, model, decoder, token_processor):
        self.preprocessor = preprocessor
        self.model = model
        self.decoder = decoder
        self.token_processor = token_processor
        self.state = None
        self.hypotheses = None

        a_c, b_c = preprocessor.channel_affine()
        wc_aug = model.folded_conv(a_c, b_c).astype(jnp.bfloat16)
        sel = model.pool_selector().astype(jnp.bfloat16)
        wmat = jnp.concatenate([model.Wa, model.Wv, model.Wf], axis=0).astype(jnp.bfloat16)
        Wj_pad, bj_pad = decoder.padded_joint()
        wj = Wj_pad.astype(jnp.bfloat16)
        bias = np.zeros((4, VPAD), np.float32)
        bias[0, :D] = np.asarray(model.ba).reshape(-1)
        bias[1, :D] = np.asarray(model.bv).reshape(-1)
        bias[2, :D] = np.asarray(model.bf).reshape(-1)
        bias[3, :] = np.asarray(bj_pad).reshape(-1)
        self._params = (wc_aug, sel, wmat, wj, jnp.asarray(bias))

    def __call__(self, audio, video):
        if audio.ndim == 2:                     # single chunk -> stream of 1
            audio = audio[None]
        if video.ndim == 4:
            video = video[None]
        tokens = _FUSED_FORWARD(audio, video, *self._params)   # (N, T, 128) int32 on device
        lengths = [tokens.shape[1]] * tokens.shape[0]
        self.hypotheses, self.state = self.decoder.finalize(
            tokens, lengths, 10, state=self.state, hypothesis=self.hypotheses)
        transcript = self.token_processor(self.hypotheses[0][0], lstrip=False)
        return transcript


# ----------------------------------------------------------------------------
# main
# ----------------------------------------------------------------------------
if __name__ == "__main__":
    key = jax.random.PRNGKey(0)
    k_audio, k_video, k_pre, k_model, k_dec = jax.random.split(key, 5)

    NCHUNKS = 4
    # Streaming inputs: N chunks of unbatched audio features and raw NCHW video.
    audio = jax.random.normal(k_audio, (NCHUNKS, T, FA), jnp.float32)
    video = jax.random.uniform(k_video, (NCHUNKS, T, C, H, W), jnp.float32,
                               minval=0.0, maxval=255.0)

    pipeline = InferencePipeline(
        Preprocessor(k_pre), Model(k_model), Decoder(k_dec), TokenProcessor()
    )

    # Streaming path: all chunks in one fused pallas_call (weights DMA'd once).
    transcript = pipeline(audio, video)
    jax.block_until_ready(pipeline.state)

    # Single-chunk path (mirrors the torch forward signature).
    transcript_one = pipeline(audio[0], video[0])
    jax.block_until_ready(pipeline.state)

    assert isinstance(transcript, str) and isinstance(transcript_one, str)
    print("KERNEL_OK")
</pallas_src>

<mosaic_0001>
module attributes {stable_mosaic.version = 11 : i64} {
  func.func @_fused_avsr_kernel(%arg0: i32, %arg1: memref<1x8x32xf32, #tpu.memory_space<vmem>>, %arg2: memref<1x392x28xbf16, #tpu.memory_space<vmem>>, %arg3: memref<28x16xbf16, #tpu.memory_space<vmem>>, %arg4: memref<8x392xbf16, #tpu.memory_space<vmem>>, %arg5: memref<112x32xbf16, #tpu.memory_space<vmem>>, %arg6: memref<32x128xbf16, #tpu.memory_space<vmem>>, %arg7: memref<4x128xf32, #tpu.memory_space<vmem>>, %arg8: memref<1x8x128xi32, #tpu.memory_space<vmem>>) attributes {dimension_semantics = [#tpu.dimension_semantics<parallel>], iteration_bounds = array<i64: 4>, scalar_prefetch = 0 : i64, scratch_operands = 0 : i64, tpu.core_type = #tpu.core_type<tc>, window_params = [{transform_indices = @transform_0, window_bounds = array<i64: 1, 8, 32>}, {transform_indices = @transform_1, window_bounds = array<i64: 1, 392, 28>}, {pipeline_mode = #tpu.pipeline_mode<synchronous>, transform_indices = @transform_2, window_bounds = array<i64: 28, 16>}, {pipeline_mode = #tpu.pipeline_mode<synchronous>, transform_indices = @transform_3, window_bounds = array<i64: 8, 392>}, {pipeline_mode = #tpu.pipeline_mode<synchronous>, transform_indices = @transform_4, window_bounds = array<i64: 112, 32>}, {pipeline_mode = #tpu.pipeline_mode<synchronous>, transform_indices = @transform_5, window_bounds = array<i64: 32, 128>}, {pipeline_mode = #tpu.pipeline_mode<synchronous>, transform_indices = @transform_6, window_bounds = array<i64: 4, 128>}, {transform_indices = @transform_7, window_bounds = array<i64: 1, 8, 128>}]} {
    %c0 = arith.constant 0 : index
    %c0_0 = arith.constant 0 : index
    %0 = vector.load %arg5[%c0, %c0_0] : memref<112x32xbf16, #tpu.memory_space<vmem>>, vector<32x32xbf16>
    %c32 = arith.constant 32 : index
    %c0_1 = arith.constant 0 : index
    %1 = vector.load %arg5[%c32, %c0_1] : memref<112x32xbf16, #tpu.memory_space<vmem>>, vector<16x32xbf16>
    %c48 = arith.constant 48 : index
    %c0_2 = arith.constant 0 : index
    %2 = vector.load %arg5[%c48, %c0_2] : memref<112x32xbf16, #tpu.memory_space<vmem>>, vector<32x32xbf16>
    %c80 = arith.constant 80 : index
    %c0_3 = arith.constant 0 : index
    %3 = vector.load %arg5[%c80, %c0_3] : memref<112x32xbf16, #tpu.memory_space<vmem>>, vector<32x32xbf16>
    %c0_4 = arith.constant 0 : index
    %c0_5 = arith.constant 0 : index
    %4 = vector.load %arg7[%c0_4, %c0_5] : memref<4x128xf32, #tpu.memory_space<vmem>>, vector<1x32xf32>
    %c1 = arith.constant 1 : index
    %c0_6 = arith.constant 0 : index
    %5 = vector.load %arg7[%c1, %c0_6] : memref<4x128xf32, #tpu.memory_space<vmem>>, vector<1x32xf32>
    %c2 = arith.constant 2 : index
    %c0_7 = arith.constant 0 : index
    %6 = vector.load %arg7[%c2, %c0_7] : memref<4x128xf32, #tpu.memory_space<vmem>>, vector<1x32xf32>
    %c3 = arith.constant 3 : index
    %c0_8 = arith.constant 0 : index
    %7 = vector.load %arg7[%c3, %c0_8] : memref<4x128xf32, #tpu.memory_space<vmem>>, vector<1x128xf32>
    %c0_9 = arith.constant 0 : index
    %c0_10 = arith.constant 0 : index
    %c0_11 = arith.constant 0 : index
    %8 = vector.load %arg1[%c0_9, %c0_10, %c0_11] : memref<1x8x32xf32, #tpu.memory_space<vmem>>, vector<1x8x32xf32>
    %9 = vector.shape_cast %8 : vector<1x8x32xf32> to vector<8x32xf32>
    %cst = arith.constant dense<0.000000e+00> : vector<32xf32>
    %10 = vector.multi_reduction <add>, %9, %cst [0] : vector<8x32xf32> to vector<32xf32>
    %11 = vector.shape_cast %10 : vector<32xf32> to vector<1x32xf32>
    %cst_12 = arith.constant 8.000000e+00 : f32
    %12 = vector.broadcast %cst_12 : f32 to vector<1x32xf32>
    %13 = arith.divf %11, %12 : vector<1x32xf32>
    %14 = vector.broadcast %13 : vector<1x32xf32> to vector<8x32xf32>
    %15 = arith.subf %9, %14 : vector<8x32xf32>
    %16 = arith.mulf %15, %15 : vector<8x32xf32>
    %cst_13 = arith.constant dense<0.000000e+00> : vector<32xf32>
    %17 = vector.multi_reduction <add>, %16, %cst_13 [0] : vector<8x32xf32> to vector<32xf32>
    %18 = vector.shape_cast %17 : vector<32xf32> to vector<1x32xf32>
    %cst_14 = arith.constant 8.000000e+00 : f32
    %19 = vector.broadcast %cst_14 : f32 to vector<1x32xf32>
    %20 = arith.divf %18, %19 : vector<1x32xf32>
    %21 = vector.broadcast %13 : vector<1x32xf32> to vector<8x32xf32>
    %22 = arith.subf %9, %21 : vector<8x32xf32>
    %cst_15 = arith.constant 9.99999997E-7 : f32
    %23 = vector.broadcast %cst_15 : f32 to vector<1x32xf32>
    %24 = arith.addf %20, %23 : vector<1x32xf32>
    %25 = math.rsqrt %24 : vector<1x32xf32>
    %26 = vector.broadcast %25 : vector<1x32xf32> to vector<8x32xf32>
    %27 = arith.mulf %22, %26 : vector<8x32xf32>
    %28 = arith.truncf %27 : vector<8x32xf32> to vector<8x32xbf16>
    %cst_16 = arith.constant dense<0.000000e+00> : vector<8x32xf32>
    %29 = tpu.matmul %28, %0, %cst_16 {dimension_numbers = #tpu.dot_dimension_numbers<[1], [0], [0], [1], [0, 0, 1, 1], [], []>} : vector<8x32xbf16>, vector<32x32xbf16>, vector<8x32xf32> -> vector<8x32xf32>
    %30 = vector.broadcast %4 : vector<1x32xf32> to vector<8x32xf32>
    %31 = arith.addf %29, %30 : vector<8x32xf32>
    %cst_17 = arith.constant 0.000000e+00 : f32
    %32 = vector.broadcast %cst_17 : f32 to vector<8x32xf32>
    %33 = arith.maximumf %31, %32 : vector<8x32xf32>
    %c0_18 = arith.constant 0 : index
    %c0_19 = arith.constant 0 : index
    %c0_20 = arith.constant 0 : index
    %34 = vector.load %arg2[%c0_18, %c0_19, %c0_20] : memref<1x392x28xbf16, #tpu.memory_space<vmem>>, vector<1x392x28xbf16>
    %35 = vector.shape_cast %34 : vector<1x392x28xbf16> to vector<392x28xbf16>
    %c0_21 = arith.constant 0 : index
    %c0_22 = arith.constant 0 : index
    %36 = vector.load %arg3[%c0_21, %c0_22] : memref<28x16xbf16, #tpu.memory_space<vmem>>, vector<28x16xbf16>
    %cst_23 = arith.constant dense<0.000000e+00> : vector<392x16xf32>
    %37 = tpu.matmul %35, %36, %cst_23 {dimension_numbers = #tpu.dot_dimension_numbers<[1], [0], [0], [1], [0, 0, 1, 1], [], []>} : vector<392x28xbf16>, vector<28x16xbf16>, vector<392x16xf32> -> vector<392x16xf32>
    %cst_24 = arith.constant 0.000000e+00 : f32
    %38 = vector.broadcast %cst_24 : f32 to vector<392x16xf32>
    %39 = arith.maximumf %37, %38 : vector<392x16xf32>
    %c0_25 = arith.constant 0 : index
    %c0_26 = arith.constant 0 : index
    %40 = vector.load %arg4[%c0_25, %c0_26] : memref<8x392xbf16, #tpu.memory_space<vmem>>, vector<8x392xbf16>
    %41 = arith.truncf %39 : vector<392x16xf32> to vector<392x16xbf16>
    %cst_27 = arith.constant dense<0.000000e+00> : vector<8x16xf32>
    %42 = tpu.matmul %40, %41, %cst_27 {dimension_numbers = #tpu.dot_dimension_numbers<[1], [0], [0], [1], [0, 0, 1, 1], [], []>} : vector<8x392xbf16>, vector<392x16xbf16>, vector<8x16xf32> -> vector<8x16xf32>
    %43 = arith.truncf %42 : vector<8x16xf32> to vector<8x16xbf16>
    %cst_28 = arith.constant dense<0.000000e+00> : vector<8x32xf32>
    %44 = tpu.matmul %43, %1, %cst_28 {dimension_numbers = #tpu.dot_dimension_numbers<[1], [0], [0], [1], [0, 0, 1, 1], [], []>} : vector<8x16xbf16>, vector<16x32xbf16>, vector<8x32xf32> -> vector<8x32xf32>
    %45 = vector.broadcast %5 : vector<1x32xf32> to vector<8x32xf32>
    %46 = arith.addf %44, %45 : vector<8x32xf32>
    %cst_29 = arith.constant 0.000000e+00 : f32
    %47 = vector.broadcast %cst_29 : f32 to vector<8x32xf32>
    %48 = arith.maximumf %46, %47 : vector<8x32xf32>
    %49 = arith.truncf %33 : vector<8x32xf32> to vector<8x32xbf16>
    %cst_30 = arith.constant dense<0.000000e+00> : vector<8x32xf32>
    %50 = tpu.matmul %49, %2, %cst_30 {dimension_numbers = #tpu.dot_dimension_numbers<[1], [0], [0], [1], [0, 0, 1, 1], [], []>} : vector<8x32xbf16>, vector<32x32xbf16>, vector<8x32xf32> -> vector<8x32xf32>
    %51 = arith.truncf %48 : vector<8x32xf32> to vector<8x32xbf16>
    %cst_31 = arith.constant dense<0.000000e+00> : vector<8x32xf32>
    %52 = tpu.matmul %51, %3, %cst_31 {dimension_numbers = #tpu.dot_dimension_numbers<[1], [0], [0], [1], [0, 0, 1, 1], [], []>} : vector<8x32xbf16>, vector<32x32xbf16>, vector<8x32xf32> -> vector<8x32xf32>
    %53 = arith.addf %50, %52 : vector<8x32xf32>
    %54 = vector.broadcast %6 : vector<1x32xf32> to vector<8x32xf32>
    %55 = arith.addf %53, %54 : vector<8x32xf32>
    %56 = arith.truncf %55 : vector<8x32xf32> to vector<8x32xbf16>
    %c0_32 = arith.constant 0 : index
    %c0_33 = arith.constant 0 : index
    %57 = vector.load %arg6[%c0_32, %c0_33] : memref<32x128xbf16, #tpu.memory_space<vmem>>, vector<32x128xbf16>
    %cst_34 = arith.constant dense<0.000000e+00> : vector<8x128xf32>
    %58 = tpu.matmul %56, %57, %cst_34 {dimension_numbers = #tpu.dot_dimension_numbers<[1], [0], [0], [1], [0, 0, 1, 1], [], []>} : vector<8x32xbf16>, vector<32x128xbf16>, vector<8x128xf32> -> vector<8x128xf32>
    %59 = vector.broadcast %7 : vector<1x128xf32> to vector<8x128xf32>
    %60 = arith.addf %58, %59 : vector<8x128xf32>
    %cst_35 = arith.constant dense<0xFF800000> : vector<8xf32>
    %61 = vector.multi_reduction <maximumf>, %60, %cst_35 [1] : vector<8x128xf32> to vector<8xf32>
    %62 = vector.shape_cast %61 : vector<8xf32> to vector<8x1xf32>
    %63 = tpu.iota {dimensions = array<i32: 1>} : vector<8x128xi32>
    %64 = vector.broadcast %62 : vector<8x1xf32> to vector<8x128xf32>
    %65 = arith.cmpf oge, %60, %64 : vector<8x128xf32>
    %c128_i32 = arith.constant 128 : i32
    %66 = vector.broadcast %c128_i32 : i32 to vector<8x128xi32>
    %67 = arith.select %65, %63, %66 : vector<8x128xi1>, vector<8x128xi32>
    %cst_36 = arith.constant dense<2147483647> : vector<8xi32>
    %68 = vector.multi_reduction <minsi>, %67, %cst_36 [1] : vector<8x128xi32> to vector<8xi32>
    %69 = vector.shape_cast %68 : vector<8xi32> to vector<8x1xi32>
    %70 = vector.shape_cast %69 : vector<8x1xi32> to vector<8x1xi32>
    %71 = vector.broadcast %70 : vector<8x1xi32> to vector<8x128xi32>
    %c0_37 = arith.constant 0 : index
    %c0_38 = arith.constant 0 : index
    %c0_39 = arith.constant 0 : index
    %72 = vector.load %arg8[%c0_37, %c0_38, %c0_39] : memref<1x8x128xi32, #tpu.memory_space<vmem>>, vector<1x8x128xi32>
    %73 = vector.shape_cast %72 : vector<1x8x128xi32> to vector<8x128xi32>
    %74 = vector.shape_cast %71 : vector<8x128xi32> to vector<1x8x128xi32>
    tpu.vector_store %arg8[%c0_37, %c0_38, %c0_39], %74 {strides = array<i32>} : memref<1x8x128xi32, #tpu.memory_space<vmem>>, vector<1x8x128xi32>,
    return
  }
  func.func @transform_0(%arg0: i32) -> (i32, i32, i32) {
    %c0_i32 = arith.constant 0 : i32
    %c0_i32_0 = arith.constant 0 : i32
    %c0_i32_1 = arith.constant 0 : i32
    return %arg0, %c0_i32, %c0_i32_0 : i32, i32, i32
  }
  func.func @transform_1(%arg0: i32) -> (i32, i32, i32) {
    %c0_i32 = arith.constant 0 : i32
    %c0_i32_0 = arith.constant 0 : i32
    %c0_i32_1 = arith.constant 0 : i32
    return %arg0, %c0_i32, %c0_i32_0 : i32, i32, i32
  }
  func.func @transform_2(%arg0: i32) -> (i32, i32) {
    %c0_i32 = arith.constant 0 : i32
    %c0_i32_0 = arith.constant 0 : i32
    %c0_i32_1 = arith.constant 0 : i32
    return %c0_i32, %c0_i32_0 : i32, i32
  }
  func.func @transform_3(%arg0: i32) -> (i32, i32) {
    %c0_i32 = arith.constant 0 : i32
    %c0_i32_0 = arith.constant 0 : i32
    %c0_i32_1 = arith.constant 0 : i32
    return %c0_i32, %c0_i32_0 : i32, i32
  }
  func.func @transform_4(%arg0: i32) -> (i32, i32) {
    %c0_i32 = arith.constant 0 : i32
    %c0_i32_0 = arith.constant 0 : i32
    %c0_i32_1 = arith.constant 0 : i32
    return %c0_i32, %c0_i32_0 : i32, i32
  }
  func.func @transform_5(%arg0: i32) -> (i32, i32) {
    %c0_i32 = arith.constant 0 : i32
    %c0_i32_0 = arith.constant 0 : i32
    %c0_i32_1 = arith.constant 0 : i32
    return %c0_i32, %c0_i32_0 : i32, i32
  }
  func.func @transform_6(%arg0: i32) -> (i32, i32) {
    %c0_i32 = arith.constant 0 : i32
    %c0_i32_0 = arith.constant 0 : i32
    %c0_i32_1 = arith.constant 0 : i32
    return %c0_i32, %c0_i32_0 : i32, i32
  }
  func.func @transform_7(%arg0: i32) -> (i32, i32, i32) {
    %c0_i32 = arith.constant 0 : i32
    %c0_i32_0 = arith.constant 0 : i32
    %c0_i32_1 = arith.constant 0 : i32
    return %arg0, %c0_i32, %c0_i32_0 : i32, i32, i32
  }
}

</mosaic_0001>

<llo_original>
// kernel: _fused_forward.1
$region0: #{_fused_forward.1}
  #allocation0 [shape = 'u32[]', space=smem, size = 0x4, offset = 0x4, fixed_abs, tag = 'smem constant byte address 0x4 - core index']
  #allocation1 [shape = 'u32[144,128]{1,0:T(1,128)}', space=vmem, size = 0x12000, scoped, tag = 'internal scratch']
  %s0 = inlined_call_operand.vmem [shape: f32[4,8,32], index: 0, kind: input, shape index: {}]
  %s1 = inlined_call_operand.vmem [shape: bf16[4,392,28], index: 1, kind: input, shape index: {}]
  %s2 = inlined_call_operand.vmem [shape: bf16[28,16], index: 2, kind: input, shape index: {}]
  %s3 = inlined_call_operand.vmem [shape: bf16[8,392], index: 3, kind: input, shape index: {}]
  %s4 = inlined_call_operand.vmem [shape: bf16[112,32], index: 4, kind: input, shape index: {}]
  %s5 = inlined_call_operand.vmem [shape: bf16[32,128], index: 5, kind: input, shape index: {}]
  %s6 = inlined_call_operand.vmem [shape: f32[4,128], index: 6, kind: input, shape index: {}]
  %s7 = inlined_call_operand.hbm [shape: s32[4,8,128], index: 7, kind: output, shape index: {}]
  %s8 = sld [smem:[#allocation0]]
  $region61: #{_fused_forward.1} parent=0
    _
  %s10 = ssub.s32 1, %s8
  %s11 = scalar_select 0, %s10, %s8
  $region1: #{_fused_forward.1} parent=0
    #allocation2 [shape = 'u8[8192]{0}', space=vmem, size = 0x2000, scoped, tag = 'output window, operand 0']
    #allocation3 [shape = 's32[2]{0}', space=sflag, size = 0x8, scoped, tag = 'scoped memory for _fused_forward.1']
    %12 = vsyncpa [#allocation3], 0
    %s13 = scalar_lea.sflag [#allocation3], 1
    %14 = vsyncpa %s13, 0
    loop: start=0, step=1, limit=6
    $region2: #{_fused_forward.1} parent=1 // loop_pre_header
      _
    $region3: #{_fused_forward.1} parent=1 // loop_header
      %s16 = sphi 0, %s20
      %p17 = scmp.ge.s32.totalorder %s16, 6
      %s26 = sphi 0, %s28
      %s29 = sphi 0, %s26
      %s30 = sphi 0, %s29
      %s46 = sphi 0, %s30
      %s52 = sphi 0, %s54
      %s55 = sphi 0, %s52
      %s56 = sphi 0, %s55
      %s72 = sphi 0, %s56
      %s76 = sphi 0, %s76
      %s78 = sphi 0, %s76
      %s79 = sphi 0, %s78
      %s93 = sphi 0, %s79
      %s97 = sphi 0, %s97
      %s99 = sphi 0, %s97
      %s100 = sphi 0, %s99
      %s114 = sphi 0, %s100
      %s118 = sphi 0, %s118
      %s120 = sphi 0, %s118
      %s121 = sphi 0, %s120
      %s135 = sphi 0, %s121
      %s139 = sphi 0, %s139
      %s141 = sphi 0, %s139
      %s142 = sphi 0, %s141
      %s156 = sphi 0, %s142
      %s160 = sphi 0, %s160
      %s162 = sphi 0, %s160
      %s163 = sphi 0, %s162
      %s177 = sphi 0, %s163
      %s183 = sphi 0, %s185
      %s186 = sphi 0, %s183
      %s187 = sphi 0, %s186
      %s203 = sphi 0, %s187
    $region4: #{_fused_forward.1} parent=1 // loop_header_branch
      %19 = sbr.rel (%p17) target = $region8
    $region5: #{_fused_forward.1} parent=1 // loop_body
      %s21 = ssub.s32 %s16, 1
      %s22 = ssub.s32 %s16, 2
      %s23 = sadd.s32 %s16, 1
      %s24 = ssub.s32 %s16, %s23
      %p25 = scmp.eq.s32.totalorder %s24, 0
      %s27 = sadd.s32 %s26, 1
      %s28 = scalar_select %p25, %s26, %s27
      %p31 = pneg %p25
      %p32 = scmp.eq.s32.totalorder %s16, 3
      %p33 = por %p31, %p32
      %p34 = scmp.ne.s32.totalorder %s26, %s29
      %p35 = scmp.eq.s32.totalorder %s16, 0
      %p36 = por %p34, %p35
      %p37 = scmp.ne.s32.totalorder %s26, %s29
      %p38 = scmp.eq.s32.totalorder %s21, 3
      %p39 = por %p37, %p38
      %p40 = scmp.ne.s32.totalorder %s29, %s30
      %p41 = scmp.eq.s32.totalorder %s21, 0
      %p42 = por %p40, %p41
      %p43 = scmp.ne.s32.totalorder %s29, %s30
      %p44 = scmp.eq.s32.totalorder %s22, 3
      %p45 = por %p43, %p44
      %p47 = scmp.ne.s32.totalorder %s30, %s46
      %p48 = scmp.eq.s32.totalorder %s22, 0
      %p49 = por %p47, %p48
      %s50 = ssub.s32 %s16, %s23
      %p51 = scmp.eq.s32.totalorder %s50, 0
      %s53 = sadd.s32 %s52, 1
      %s54 = scalar_select %p51, %s52, %s53
      %p57 = pneg %p51
      %p58 = scmp.eq.s32.totalorder %s16, 3
      %p59 = por %p57, %p58
      %p60 = scmp.ne.s32.totalorder %s52, %s55
      %p61 = scmp.eq.s32.totalorder %s16, 0
      %p62 = por %p60, %p61
      %p63 = scmp.ne.s32.totalorder %s52, %s55
      %p64 = scmp.eq.s32.totalorder %s21, 3
      %p65 = por %p63, %p64
      %p66 = scmp.ne.s32.totalorder %s55, %s56
      %p67 = scmp.eq.s32.totalorder %s21, 0
      %p68 = por %p66, %p67
      %p69 = scmp.ne.s32.totalorder %s55, %s56
      %p70 = scmp.eq.s32.totalorder %s22, 3
      %p71 = por %p69, %p70
      %p73 = scmp.ne.s32.totalorder %s56, %s72
      %p74 = scmp.eq.s32.totalorder %s22, 0
      %p75 = por %p73, %p74
      %s77 = sadd.s32 %s76, 1
      %p80 = scmp.eq.s32.totalorder %s16, 3
      %p81 = scmp.ne.s32.totalorder %s76, %s78
      %p82 = scmp.eq.s32.totalorder %s16, 0
      %p83 = por %p81, %p82
      %p84 = scmp.ne.s32.totalorder %s76, %s78
      %p85 = scmp.eq.s32.totalorder %s21, 3
      %p86 = por %p84, %p85
      %p87 = scmp.ne.s32.totalorder %s78, %s79
      %p88 = scmp.eq.s32.totalorder %s21, 0
      %p89 = por %p87, %p88
      %p90 = scmp.ne.s32.totalorder %s78, %s79
      %p91 = scmp.eq.s32.totalorder %s22, 3
      %p92 = por %p90, %p91
      %p94 = scmp.ne.s32.totalorder %s79, %s93
      %p95 = scmp.eq.s32.totalorder %s22, 0
      %p96 = por %p94, %p95
      %s98 = sadd.s32 %s97, 1
      %p101 = scmp.eq.s32.totalorder %s16, 3
      %p102 = scmp.ne.s32.totalorder %s97, %s99
      %p103 = scmp.eq.s32.totalorder %s16, 0
      %p104 = por %p102, %p103
      %p105 = scmp.ne.s32.totalorder %s97, %s99
      %p106 = scmp.eq.s32.totalorder %s21, 3
      %p107 = por %p105, %p106
      %p108 = scmp.ne.s32.totalorder %s99, %s100
      %p109 = scmp.eq.s32.totalorder %s21, 0
      %p110 = por %p108, %p109
      %p111 = scmp.ne.s32.totalorder %s99, %s100
      %p112 = scmp.eq.s32.totalorder %s22, 3
      %p113 = por %p111, %p112
      %p115 = scmp.ne.s32.totalorder %s100, %s114
      %p116 = scmp.eq.s32.totalorder %s22, 0
      %p117 = por %p115, %p116
      %s119 = sadd.s32 %s118, 1
      %p122 = scmp.eq.s32.totalorder %s16, 3
      %p123 = scmp.ne.s32.totalorder %s118, %s120
      %p124 = scmp.eq.s32.totalorder %s16, 0
      %p125 = por %p123, %p124
      %p126 = scmp.ne.s32.totalorder %s118, %s120
      %p127 = scmp.eq.s32.totalorder %s21, 3
      %p128 = por %p126, %p127
      %p129 = scmp.ne.s32.totalorder %s120, %s121
      %p130 = scmp.eq.s32.totalorder %s21, 0
      %p131 = por %p129, %p130
      %p132 = scmp.ne.s32.totalorder %s120, %s121
      %p133 = scmp.eq.s32.totalorder %s22, 3
      %p134 = por %p132, %p133
      %p136 = scmp.ne.s32.totalorder %s121, %s135
      %p137 = scmp.eq.s32.totalorder %s22, 0
      %p138 = por %p136, %p137
      %s140 = sadd.s32 %s139, 1
      %p143 = scmp.eq.s32.totalorder %s16, 3
      %p144 = scmp.ne.s32.totalorder %s139, %s141
      %p145 = scmp.eq.s32.totalorder %s16, 0
      %p146 = por %p144, %p145
      %p147 = scmp.ne.s32.totalorder %s139, %s141
      %p148 = scmp.eq.s32.totalorder %s21, 3
      %p149 = por %p147, %p148
      %p150 = scmp.ne.s32.totalorder %s141, %s142
      %p151 = scmp.eq.s32.totalorder %s21, 0
      %p152 = por %p150, %p151
      %p153 = scmp.ne.s32.totalorder %s141, %s142
      %p154 = scmp.eq.s32.totalorder %s22, 3
      %p155 = por %p153, %p154
      %p157 = scmp.ne.s32.totalorder %s142, %s156
      %p158 = scmp.eq.s32.totalorder %s22, 0
      %p159 = por %p157, %p158
      %s161 = sadd.s32 %s160, 1
      %p164 = scmp.eq.s32.totalorder %s16, 3
      %p165 = scmp.ne.s32.totalorder %s160, %s162
      %p166 = scmp.eq.s32.totalorder %s16, 0
      %p167 = por %p165, %p166
      %p168 = scmp.ne.s32.totalorder %s160, %s162
      %p169 = scmp.eq.s32.totalorder %s21, 3
      %p170 = por %p168, %p169
      %p171 = scmp.ne.s32.totalorder %s162, %s163
      %p172 = scmp.eq.s32.totalorder %s21, 0
      %p173 = por %p171, %p172
      %p174 = scmp.ne.s32.totalorder %s162, %s163
      %p175 = scmp.eq.s32.totalorder %s22, 3
      %p176 = por %p174, %p175
      %p178 = scmp.ne.s32.totalorder %s163, %s177
      %p179 = scmp.eq.s32.totalorder %s22, 0
      %p180 = por %p178, %p179
      %s181 = ssub.s32 %s16, %s23
      %p182 = scmp.eq.s32.totalorder %s181, 0
      %s184 = sadd.s32 %s183, 1
      %s185 = scalar_select %p182, %s183, %s184
      %p188 = pneg %p182
      %p189 = scmp.eq.s32.totalorder %s16, 3
      %p190 = por %p188, %p189
      %p191 = scmp.ne.s32.totalorder %s183, %s186
      %p192 = scmp.eq.s32.totalorder %s16, 0
      %p193 = por %p191, %p192
      %p194 = scmp.ne.s32.totalorder %s183, %s186
      %p195 = scmp.eq.s32.totalorder %s21, 3
      %p196 = por %p194, %p195
      %p197 = scmp.ne.s32.totalorder %s186, %s187
      %p198 = scmp.eq.s32.totalorder %s21, 0
      %p199 = por %p197, %p198
      %p200 = scmp.ne.s32.totalorder %s186, %s187
      %p201 = scmp.eq.s32.totalorder %s22, 3
      %p202 = por %p200, %p201
      %p204 = scmp.ne.s32.totalorder %s187, %s203
      %p205 = scmp.eq.s32.totalorder %s22, 0
      %p206 = por %p204, %p205
      %p207 = scmp.le.s32.totalorder 1, %s16
      %p208 = scmp.lt.s32.totalorder %s16, 5
      %p209 = pnand %p207, %p208
      %p210 = pneg %p209
      // Predicated region
      $region9: #{_fused_forward.1} parent=5 // pred_check
        _
      $region10: #{_fused_forward.1} parent=5 // pred_check_branch
        %212 = sbr.rel (%p209) target = $region12
      $region11: #{_fused_forward.1} parent=5 // pred_region
        %s213 = ssub.s32 %s16, 1
        // Predicated region
        $region13: #{_fused_forward.1} parent=11 // pred_check
          %p214 = pneg %p89
        $region14: #{_fused_forward.1} parent=11 // pred_check_branch
          %216 = sbr.rel (%p214) target = $region16
        $region15: #{_fused_forward.1} parent=11 // pred_region
          _
        $region16: #{_fused_forward.1} parent=11 // pred_fallthru
          _
        // Predicated region
        $region17: #{_fused_forward.1} parent=11 // pred_check
          %p217 = pneg %p110
        $region18: #{_fused_forward.1} parent=11 // pred_check_branch
          %219 = sbr.rel (%p217) target = $region20
        $region19: #{_fused_forward.1} parent=11 // pred_region
          _
        $region20: #{_fused_forward.1} parent=11 // pred_fallthru
          _
        // Predicated region
        $region21: #{_fused_forward.1} parent=11 // pred_check
          %p220 = pneg %p131
        $region22: #{_fused_forward.1} parent=11 // pred_check_branch
          %222 = sbr.rel (%p220) target = $region24
        $region23: #{_fused_forward.1} parent=11 // pred_region
          _
        $region24: #{_fused_forward.1} parent=11 // pred_fallthru
          _
        // Predicated region
        $region25: #{_fused_forward.1} parent=11 // pred_check
          %p223 = pneg %p152
        $region26: #{_fused_forward.1} parent=11 // pred_check_branch
          %225 = sbr.rel (%p223) target = $region28
        $region27: #{_fused_forward.1} parent=11 // pred_region
          _
        $region28: #{_fused_forward.1} parent=11 // pred_fallthru
          _
        // Predicated region
        $region29: #{_fused_forward.1} parent=11 // pred_check
          %p226 = pneg %p173
        $region30: #{_fused_forward.1} parent=11 // pred_check_branch
          %228 = sbr.rel (%p226) target = $region32
        $region31: #{_fused_forward.1} parent=11 // pred_region
          _
        $region32: #{_fused_forward.1} parent=11 // pred_fallthru
          _
      $region12: #{_fused_forward.1} parent=5 // pred_fallthru
        _
      %p229 = scmp.lt.s32.totalorder %s16, 4
      // Predicated region
      $region33: #{_fused_forward.1} parent=5 // pred_check
        %p230 = pneg %p229
      $region34: #{_fused_forward.1} parent=5 // pred_check_branch
        %232 = sbr.rel (%p230) target = $region36
      $region35: #{_fused_forward.1} parent=5 // pred_region
        // Predicated region
        $region37: #{_fused_forward.1} parent=35 // pred_check
          %p233 = pneg %p36
        $region38: #{_fused_forward.1} parent=35 // pred_check_branch
          %235 = sbr.rel (%p233) target = $region40
        $region39: #{_fused_forward.1} parent=35 // pred_region
          %p236 = scmp.lt.s32.totalorder %s16, 3
          %s237 = scalar_select %p236, %s16, 3
          %s238 = smul.addr %s237, 8
          %s239 = scalar_lea.vmem %s0, %s238
        $region40: #{_fused_forward.1} parent=35 // pred_fallthru
          _
        // Predicated region
        $region41: #{_fused_forward.1} parent=35 // pred_check
          %p240 = pneg %p62
        $region42: #{_fused_forward.1} parent=35 // pred_check_branch
          %242 = sbr.rel (%p240) target = $region44
        $region43: #{_fused_forward.1} parent=35 // pred_region
          %p243 = scmp.lt.s32.totalorder %s16, 3
          %s244 = scalar_select %p243, %s16, 3
          %s245 = smul.addr %s244, 49
          %s246 = smul.addr %s245, 4
          %s247 = scalar_lea.vmem %s1, %s246
        $region44: #{_fused_forward.1} parent=35 // pred_fallthru
          _
      $region36: #{_fused_forward.1} parent=5 // pred_fallthru
        _
      %p248 = scmp.le.s32.totalorder 1, %s16
      %p249 = scmp.lt.s32.totalorder %s16, 5
      %p250 = pnand %p248, %p249
      %p251 = pneg %p250
      // Predicated region
      $region45: #{_fused_forward.1} parent=5 // pred_check
        _
      $region46: #{_fused_forward.1} parent=5 // pred_check_branch
        %253 = sbr.rel (%p250) target = $region48
      $region47: #{_fused_forward.1} parent=5 // pred_region
        %s254 = ssub.s32 %s16, 1
        %p255 = scmp.lt.s32.totalorder %s21, 3
        %s256 = scalar_select %p255, %s21, 3
        %s257 = smul.addr %s256, 8
        %s258 = scalar_lea.vmem %s0, %s257
        %p259 = pneg %p42
        %p260 = pneg %p39
        %p261 = scmp.lt.s32.totalorder %s21, 3
        %s262 = scalar_select %p261, %s21, 3
        %s263 = smul.addr %s262, 49
        %s264 = smul.addr %s263, 4
        %s265 = scalar_lea.vmem %s1, %s264
        %p266 = pneg %p68
        %p267 = pneg %p65
        %p268 = pneg %p89
        %p269 = pneg %p86
        %p270 = pneg %p110
        %p271 = pneg %p107
        %p272 = pneg %p131
        %p273 = pneg %p128
        %p274 = pneg %p152
        %p275 = pneg %p149
        %p276 = pneg %p173
        %p277 = pneg %p170
        %p278 = pneg %p199
        %p279 = pneg %p196
        %s280 = sand.u32 %s186, 1
        %s281 = scalar_lea.sflag [#allocation3], %s280
        %s282 = sand.u32 %s186, 1
        %s283 = smul.addr %s282, 8
        %s284 = scalar_lea.vmem [#allocation2], %s283
        %p285 = scmp.lt.s32.totalorder %s21, 3
        %s286 = scalar_select %p285, %s21, 3
        %s287 = smul.addr %s286, 8
        %s288 = scalar_lea.vmem %s0, %s287
        %p289 = scmp.lt.s32.totalorder %s21, 3
        %s290 = scalar_select %p289, %s21, 3
        %s291 = smul.addr %s290, 49
        %s292 = smul.addr %s291, 4
        %s293 = scalar_lea.vmem %s1, %s292
        %v295 = vld [vmem:[%s4] sm:$0xf]
        %v296 = vld [vmem:[%s4 + $0x4] sm:$0xf]
        %v297 = vld [vmem:[%s4 + $0x8] sm:$0xf]
        %v298 = vld [vmem:[%s4 + $0xc] sm:$0xf]
        %v299 = vld [vmem:[%s4 + $0x10] sm:$0xf]
        %v300 = vld [vmem:[%s4 + $0x14] sm:$0xf]
        %v301 = vld [vmem:[%s4 + $0x18] sm:$0xf]
        %v302 = vld [vmem:[%s4 + $0x1c] sm:$0xf]
        %v303 = vld [vmem:[%s4 + $0x20] sm:$0xf]
        %v304 = vld [vmem:[%s4 + $0x24] sm:$0xf]
        %v305 = vld [vmem:[%s4 + $0x28] sm:$0xf]
        %v306 = vld [vmem:[%s4 + $0x2c] sm:$0xf]
        %v307 = vld [vmem:[%s4 + $0x30] sm:$0xf]
        %v308 = vld [vmem:[%s4 + $0x34] sm:$0xf]
        %v309 = vld [vmem:[%s6] sm:$0x1]
        %v310 = vld [vmem:[%s6 + $0x1] sm:$0x1]
        %v311 = vld [vmem:[%s6 + $0x2] sm:$0x1]
        %v312 = vld [vmem:[%s6 + $0x3] sm:$0x1]
        %v313 = vld [vmem:[%s288] sm:$0xff]
        %vm314 = vcmask 261120
        %v315 = vsel %vm314, %v313, 0.0
        %v316 = vrot.slane %v315, 4
        %v317 = vadd.f32 %v315, %v316
        %v318 = vrot.slane %v317, 2
        %v319 = vadd.f32 %v317, %v318
        %v320 = vrot.slane %v319, 1
        %v321 = vadd.f32 %v319, %v320
        %v322 = vrcp.pop 8.0
        %v323 = vmul.f32 %v321, %v322
        %v324 = vsub.f32 %v313, %v323
        %v325 = vmul.f32 %v324, %v324
        %v326 = vsel %vm314, %v325, 0.0
        %v327 = vrot.slane %v326, 4
        %v328 = vadd.f32 %v326, %v327
        %v329 = vrot.slane %v328, 2
        %v330 = vadd.f32 %v328, %v329
        %v331 = vrot.slane %v330, 1
        %v332 = vadd.f32 %v330, %v331
        %v333 = vmul.f32 %v332, %v322
        %v334 = vadd.f32 %v333, 1e-06
        %v335 = vrsqrt.pop %v334
        %v336 = vmul.f32 %v324, %v335
        %v337 = vpack.c.bf16 %v336, %v336
        %v338 = vlaneseq
        %v339 = vshrl.u32 %v338, 7
        %v340 = vsub.s32 0, %v339
        %v341 = vrot.slane %v309, %v340
        %v346 = vunpack.c.l.b16 %v295
        %v347 = vunpack.c.l.b16 %v296
        %v348 = vunpack.c.l.b16 %v297
        %v349 = vunpack.c.l.b16 %v298
        %v350 = vpack.c.b16 %v347, %v346
        %v351 = vpack.c.b16 %v349, %v348
        %v355 = vsel %vm314, %v337, 0
        %357 = vmatprep.subr.bf16.mxu0 0
        %358 = vmatpush1.bf16.msra.mxu0 %v350
        %359 = vmatprep.subr.bf16.mxu0 0
        %360 = vmatpush1.bf16.msra.mxu0 %v351
        %361 = vmatprep.subr.bf16.mxu0 0
        %362 = vmatpush1.bf16.msra.mxu0 0
        %363 = vmatprep.subr.bf16.mxu0 0
        %364 = vmatpush1.bf16.msra.mxu0 0
        %365 = vmatprep.subr.bf16.mxu0 0
        %366 = vmatpush1.bf16.msra.mxu0 0
        %367 = vmatprep.subr.bf16.mxu0 0
        %368 = vmatpush1.bf16.msra.mxu0 0
        %369 = vmatprep.subr.bf16.mxu0 0
        %370 = vmatpush1.bf16.msra.mxu0 0
        %371 = vmatprep.subr.bf16.mxu0 0
        %372 = vmatpush1.bf16.msra.mxu0 0
        %373 = vmatprep.subr.bf16.mxu0 0
        %374 = vmatpush1.bf16.msra.mxu0 0
        %375 = vmatprep.subr.bf16.mxu0 0
        %376 = vmatpush1.bf16.msra.mxu0 0
        %377 = vmatprep.subr.bf16.mxu0 0
        %378 = vmatpush1.bf16.msra.mxu0 0
        %379 = vmatprep.subr.bf16.mxu0 0
        %380 = vmatpush1.bf16.msra.mxu0 0
        %381 = vmatprep.subr.bf16.mxu0 0
        %382 = vmatpush1.bf16.msra.mxu0 0
        %383 = vmatprep.subr.bf16.mxu0 0
        %384 = vmatpush1.bf16.msra.mxu0 0
        %385 = vmatprep.subr.bf16.mxu0 0
        %386 = vmatpush1.bf16.msra.mxu0 0
        %387 = vmatprep.subr.bf16.mxu0 0
        %388 = vmatpush1.bf16.msra.mxu0 0
        %389 = vmatprep.mubr.bf16.mxu0 0
        %390 = vmatmul.mubr.bf16.gmra.mrb[0].mxu0 %v355
        %v391 = vpop.f32.mrb[0].mxu0
        %v392 = vadd.f32 %v341, %v391
        %v393 = vpop.f32.mrb[0].mxu0
        %v394 = vpop.f32.mrb[0].mxu0
        %v395 = vpop.f32.mrb[0].mxu0
        %396 = vdwg.mxu0
        %v397 = vmax.f32 %v392, 0.0
        %v398 = vld [vmem:[%s293] sm:$0xf]
        %v399 = vld [vmem:[%s293 + $0x4] sm:$0xf]
        %v400 = vld [vmem:[%s293 + $0x8] sm:$0xf]
        %v401 = vld [vmem:[%s293 + $0xc] sm:$0xf]
        %v402 = vld [vmem:[%s293 + $0x10] sm:$0xf]
        %v403 = vld [vmem:[%s293 + $0x14] sm:$0xf]
        %v404 = vld [vmem:[%s293 + $0x18] sm:$0xf]
        %v405 = vld [vmem:[%s293 + $0x1c] sm:$0xf]
        %v406 = vld [vmem:[%s293 + $0x20] sm:$0xf]
        %v407 = vld [vmem:[%s293 + $0x24] sm:$0xf]
        %v408 = vld [vmem:[%s293 + $0x28] sm:$0xf]
        %v409 = vld [vmem:[%s293 + $0x2c] sm:$0xf]
        %v410 = vld [vmem:[%s293 + $0x30] sm:$0xf]
        %v411 = vld [vmem:[%s293 + $0x34] sm:$0xf]
        %v412 = vld [vmem:[%s293 + $0x38] sm:$0xf]
        %v413 = vld [vmem:[%s293 + $0x3c] sm:$0xf]
        %v414 = vld [vmem:[%s293 + $0x40] sm:$0xf]
        %v415 = vld [vmem:[%s293 + $0x44] sm:$0xf]
        %v416 = vld [vmem:[%s293 + $0x48] sm:$0xf]
        %v417 = vld [vmem:[%s293 + $0x4c] sm:$0xf]
        %v418 = vld [vmem:[%s293 + $0x50] sm:$0xf]
        %v419 = vld [vmem:[%s293 + $0x54] sm:$0xf]
        %v420 = vld [vmem:[%s293 + $0x58] sm:$0xf]
        %v421 = vld [vmem:[%s293 + $0x5c] sm:$0xf]
        %v422 = vld [vmem:[%s293 + $0x60] sm:$0xf]
        %v423 = vld [vmem:[%s293 + $0x64] sm:$0xf]
        %v424 = vld [vmem:[%s293 + $0x68] sm:$0xf]
        %v425 = vld [vmem:[%s293 + $0x6c] sm:$0xf]
        %v426 = vld [vmem:[%s293 + $0x70] sm:$0xf]
        %v427 = vld [vmem:[%s293 + $0x74] sm:$0xf]
        %v428 = vld [vmem:[%s293 + $0x78] sm:$0xf]
        %v429 = vld [vmem:[%s293 + $0x7c] sm:$0xf]
        %v430 = vld [vmem:[%s293 + $0x80] sm:$0xf]
        %v431 = vld [vmem:[%s293 + $0x84] sm:$0xf]
        %v432 = vld [vmem:[%s293 + $0x88] sm:$0xf]
        %v433 = vld [vmem:[%s293 + $0x8c] sm:$0xf]
        %v434 = vld [vmem:[%s293 + $0x90] sm:$0xf]
        %v435 = vld [vmem:[%s293 + $0x94] sm:$0xf]
        %v436 = vld [vmem:[%s293 + $0x98] sm:$0xf]
        %v437 = vld [vmem:[%s293 + $0x9c] sm:$0xf]
        %v438 = vld [vmem:[%s293 + $0xa0] sm:$0xf]
        %v439 = vld [vmem:[%s293 + $0xa4] sm:$0xf]
        %v440 = vld [vmem:[%s293 + $0xa8] sm:$0xf]
        %v441 = vld [vmem:[%s293 + $0xac] sm:$0xf]
        %v442 = vld [vmem:[%s293 + $0xb0] sm:$0xf]
        %v443 = vld [vmem:[%s293 + $0xb4] sm:$0xf]
        %v444 = vld [vmem:[%s293 + $0xb8] sm:$0xf]
        %v445 = vld [vmem:[%s293 + $0xbc] sm:$0xf]
        %v446 = vld [vmem:[%s293 + $0xc0] sm:$0xf]
        %v447 = vld [vmem:[%s2] sm:$0xf]
        %v448 = vld [vmem:[%s2 + $0x4] sm:$0xf]
        %v449 = vld [vmem:[%s2 + $0x8] sm:$0xf]
        %v450 = vld [vmem:[%s2 + $0xc] sm:$0x3]
        %v500 = vunpack.c.l.b16 %v398
        %v501 = vunpack.c.l.b16 %v399
        %v502 = vunpack.c.l.b16 %v400
        %v503 = vunpack.c.l.b16 %v401
        %v504 = vunpack.c.l.b16 %v402
        %v505 = vunpack.c.l.b16 %v403
        %v506 = vunpack.c.l.b16 %v404
        %v507 = vunpack.c.l.b16 %v405
        %v508 = vunpack.c.l.b16 %v406
        %v509 = vunpack.c.l.b16 %v407
        %v510 = vunpack.c.l.b16 %v408
        %v511 = vunpack.c.l.b16 %v409
        %v512 = vunpack.c.l.b16 %v410
        %v513 = vunpack.c.l.b16 %v411
        %v514 = vunpack.c.l.b16 %v412
        %v515 = vunpack.c.l.b16 %v413
        %v516 = vunpack.c.l.b16 %v414
        %v517 = vunpack.c.l.b16 %v415
        %v518 = vunpack.c.l.b16 %v416
        %v519 = vunpack.c.l.b16 %v417
        %v520 = vunpack.c.l.b16 %v418
        %v521 = vunpack.c.l.b16 %v419
        %v522 = vunpack.c.l.b16 %v420
        %v523 = vunpack.c.l.b16 %v421
        %v524 = vunpack.c.l.b16 %v422
        %v525 = vunpack.c.l.b16 %v423
        %v526 = vunpack.c.l.b16 %v424
        %v527 = vunpack.c.l.b16 %v425
        %v528 = vunpack.c.l.b16 %v426
        %v529 = vunpack.c.l.b16 %v427
        %v530 = vunpack.c.l.b16 %v428
        %v531 = vunpack.c.l.b16 %v429
        %v532 = vunpack.c.l.b16 %v430
        %v533 = vunpack.c.l.b16 %v431
        %v534 = vunpack.c.l.b16 %v432
        %v535 = vunpack.c.l.b16 %v433
        %v536 = vunpack.c.l.b16 %v434
        %v537 = vunpack.c.l.b16 %v435
        %v538 = vunpack.c.l.b16 %v436
        %v539 = vunpack.c.l.b16 %v437
        %v540 = vunpack.c.l.b16 %v438
        %v541 = vunpack.c.l.b16 %v439
        %v542 = vunpack.c.l.b16 %v440
        %v543 = vunpack.c.l.b16 %v441
        %v544 = vunpack.c.l.b16 %v442
        %v545 = vunpack.c.l.b16 %v443
        %v546 = vunpack.c.l.b16 %v444
        %v547 = vunpack.c.l.b16 %v445
        %v548 = vunpack.c.l.b16 %v446
        %v549 = vpack.c.b16 %v501, %v500
        %v550 = vpack.c.b16 %v503, %v502
        %v551 = vpack.c.b16 %v505, %v504
        %v552 = vpack.c.b16 %v507, %v506
        %v553 = vpack.c.b16 %v509, %v508
        %v554 = vpack.c.b16 %v511, %v510
        %v555 = vpack.c.b16 %v513, %v512
        %v556 = vpack.c.b16 %v515, %v514
        %v557 = vpack.c.b16 %v517, %v516
        %v558 = vpack.c.b16 %v519, %v518
        %v559 = vpack.c.b16 %v521, %v520
        %v560 = vpack.c.b16 %v523, %v522
        %v561 = vpack.c.b16 %v525, %v524
        %v562 = vpack.c.b16 %v527, %v526
        %v563 = vpack.c.b16 %v529, %v528
        %v564 = vpack.c.b16 %v531, %v530
        %v565 = vpack.c.b16 %v533, %v532
        %v566 = vpack.c.b16 %v535, %v534
        %v567 = vpack.c.b16 %v537, %v536
        %v568 = vpack.c.b16 %v539, %v538
        %v569 = vpack.c.b16 %v541, %v540
        %v570 = vpack.c.b16 %v543, %v542
        %v571 = vpack.c.b16 %v545, %v544
        %v572 = vpack.c.b16 %v547, %v546
        %v573 = vpack.c.b16 %v548, %v548
        %v578 = vunpack.c.l.b16 %v447
        %v579 = vunpack.c.l.b16 %v448
        %v580 = vunpack.c.l.b16 %v449
        %v581 = vunpack.c.l.b16 %v450
        %v582 = vpack.c.b16 %v579, %v578
        %v583 = vpack.c.b16 %v581, %v580
        %vm585 = vcmask 228352
        %v587 = vsel %vm585, %v549, 0
        %v590 = vsel %vm585, %v550, 0
        %v593 = vsel %vm585, %v551, 0
        %v596 = vsel %vm585, %v552, 0
        %v599 = vsel %vm585, %v553, 0
        %v602 = vsel %vm585, %v554, 0
        %v605 = vsel %vm585, %v555, 0
        %v608 = vsel %vm585, %v556, 0
        %v611 = vsel %vm585, %v557, 0
        %v614 = vsel %vm585, %v558, 0
        %v617 = vsel %vm585, %v559, 0
        %v620 = vsel %vm585, %v560, 0
        %v623 = vsel %vm585, %v561, 0
        %v626 = vsel %vm585, %v562, 0
        %v629 = vsel %vm585, %v563, 0
        %v632 = vsel %vm585, %v564, 0
        %v635 = vsel %vm585, %v565, 0
        %v638 = vsel %vm585, %v566, 0
        %v641 = vsel %vm585, %v567, 0
        %v644 = vsel %vm585, %v568, 0
        %v647 = vsel %vm585, %v569, 0
        %v650 = vsel %vm585, %v570, 0
        %v653 = vsel %vm585, %v571, 0
        %v656 = vsel %vm585, %v572, 0
        %v659 = vsel %vm585, %v573, 0
        %vm661 = vcmask 1045504
        %v663 = vsel %vm661, %v583, 0
        %665 = vmatprep.subr.bf16.mxu0 0
        %666 = vmatpush1.bf16.msra.mxu0 %v582
        %667 = vmatprep.subr.bf16.mxu0 0
        %668 = vmatpush1.bf16.msra.mxu0 %v663
        %669 = vmatprep.subr.bf16.mxu0 0
        %670 = vmatpush1.bf16.msra.mxu0 0
        %671 = vmatprep.subr.bf16.mxu0 0
        %672 = vmatpush1.bf16.msra.mxu0 0
        %673 = vmatprep.subr.bf16.mxu0 0
        %674 = vmatpush1.bf16.msra.mxu0 0
        %675 = vmatprep.subr.bf16.mxu0 0
        %676 = vmatpush1.bf16.msra.mxu0 0
        %677 = vmatprep.subr.bf16.mxu0 0
        %678 = vmatpush1.bf16.msra.mxu0 0
        %679 = vmatprep.subr.bf16.mxu0 0
        %680 = vmatpush1.bf16.msra.mxu0 0
        %681 = vmatprep.subr.bf16.mxu0 0
        %682 = vmatpush1.bf16.msra.mxu0 0
        %683 = vmatprep.subr.bf16.mxu0 0
        %684 = vmatpush1.bf16.msra.mxu0 0
        %685 = vmatprep.subr.bf16.mxu0 0
        %686 = vmatpush1.bf16.msra.mxu0 0
        %687 = vmatprep.subr.bf16.mxu0 0
        %688 = vmatpush1.bf16.msra.mxu0 0
        %689 = vmatprep.subr.bf16.mxu0 0
        %690 = vmatpush1.bf16.msra.mxu0 0
        %691 = vmatprep.subr.bf16.mxu0 0
        %692 = vmatpush1.bf16.msra.mxu0 0
        %693 = vmatprep.subr.bf16.mxu0 0
        %694 = vmatpush1.bf16.msra.mxu0 0
        %695 = vmatprep.subr.bf16.mxu0 0
        %696 = vmatpush1.bf16.msra.mxu0 0
        %697 = vmatprep.mubr.bf16.mxu0 0
        %698 = vmatmul.mubr.bf16.gmra.mrb[0].mxu0 %v587
        %v699 = vpop.f32.mrb[0].mxu0
        %v700 = vadd.f32 0.0, %v699
        %v701 = vpop.f32.mrb[0].mxu0
        %v702 = vpop.f32.mrb[0].mxu0
        %v703 = vadd.f32 0.0, %v702
        %v704 = vpop.f32.mrb[0].mxu0
        %705 = vmatprep.mubr.bf16.mxu0 0
        %706 = vmatmul.mubr.bf16.gmra.mrb[0].mxu0 %v590
        %v707 = vpop.f32.mrb[0].mxu0
        %v708 = vadd.f32 0.0, %v707
        %v709 = vpop.f32.mrb[0].mxu0
        %v710 = vpop.f32.mrb[0].mxu0
        %v711 = vadd.f32 0.0, %v710
        %v712 = vpop.f32.mrb[0].mxu0
        %713 = vmatprep.mubr.bf16.mxu0 0
        %714 = vmatmul.mubr.bf16.gmra.mrb[0].mxu0 %v593
        %v715 = vpop.f32.mrb[0].mxu0
        %v716 = vadd.f32 0.0, %v715
        %v717 = vpop.f32.mrb[0].mxu0
        %v718 = vpop.f32.mrb[0].mxu0
        %v719 = vadd.f32 0.0, %v718
        %v720 = vpop.f32.mrb[0].mxu0
        %721 = vmatprep.mubr.bf16.mxu0 0
        %722 = vmatmul.mubr.bf16.gmra.mrb[0].mxu0 %v596
        %v723 = vpop.f32.mrb[0].mxu0
        %v724 = vadd.f32 0.0, %v723
        %v725 = vpop.f32.mrb[0].mxu0
        %v726 = vpop.f32.mrb[0].mxu0
        %v727 = vadd.f32 0.0, %v726
        %v728 = vpop.f32.mrb[0].mxu0
        %729 = vmatprep.mubr.bf16.mxu0 0
        %730 = vmatmul.mubr.bf16.gmra.mrb[0].mxu0 %v599
        %v731 = vpop.f32.mrb[0].mxu0
        %v732 = vadd.f32 0.0, %v731
        %v733 = vpop.f32.mrb[0].mxu0
        %v734 = vpop.f32.mrb[0].mxu0
        %v735 = vadd.f32 0.0, %v734
        %v736 = vpop.f32.mrb[0].mxu0
        %737 = vmatprep.mubr.bf16.mxu0 0
        %738 = vmatmul.mubr.bf16.gmra.mrb[0].mxu0 %v602
        %v739 = vpop.f32.mrb[0].mxu0
        %v740 = vadd.f32 0.0, %v739
        %v741 = vpop.f32.mrb[0].mxu0
        %v742 = vpop.f32.mrb[0].mxu0
        %v743 = vadd.f32 0.0, %v742
        %v744 = vpop.f32.mrb[0].mxu0
        %745 = vmatprep.mubr.bf16.mxu0 0
        %746 = vmatmul.mubr.bf16.gmra.mrb[0].mxu0 %v605
        %v747 = vpop.f32.mrb[0].mxu0
        %v748 = vadd.f32 0.0, %v747
        %v749 = vpop.f32.mrb[0].mxu0
        %v750 = vpop.f32.mrb[0].mxu0
        %v751 = vadd.f32 0.0, %v750
        %v752 = vpop.f32.mrb[0].mxu0
        %753 = vmatprep.mubr.bf16.mxu0 0
        %754 = vmatmul.mubr.bf16.gmra.mrb[0].mxu0 %v608
        %v755 = vpop.f32.mrb[0].mxu0
        %v756 = vadd.f32 0.0, %v755
        %v757 = vpop.f32.mrb[0].mxu0
        %v758 = vpop.f32.mrb[0].mxu0
        %v759 = vadd.f32 0.0, %v758
        %v760 = vpop.f32.mrb[0].mxu0
        %761 = vmatprep.mubr.bf16.mxu0 0
        %762 = vmatmul.mubr.bf16.gmra.mrb[0].mxu0 %v611
        %v763 = vpop.f32.mrb[0].mxu0
        %v764 = vadd.f32 0.0, %v763
        %v765 = vpop.f32.mrb[0].mxu0
        %v766 = vpop.f32.mrb[0].mxu0
        %v767 = vadd.f32 0.0, %v766
        %v768 = vpop.f32.mrb[0].mxu0
        %769 = vmatprep.mubr.bf16.mxu0 0
        %770 = vmatmul.mubr.bf16.gmra.mrb[0].mxu0 %v614
        %v771 = vpop.f32.mrb[0].mxu0
        %v772 = vadd.f32 0.0, %v771
        %v773 = vpop.f32.mrb[0].mxu0
        %v774 = vpop.f32.mrb[0].mxu0
        %v775 = vadd.f32 0.0, %v774
        %v776 = vpop.f32.mrb[0].mxu0
        %777 = vmatprep.mubr.bf16.mxu0 0
        %778 = vmatmul.mubr.bf16.gmra.mrb[0].mxu0 %v617
        %v779 = vpop.f32.mrb[0].mxu0
        %v780 = vadd.f32 0.0, %v779
        %v781 = vpop.f32.mrb[0].mxu0
        %v782 = vpop.f32.mrb[0].mxu0
        %v783 = vadd.f32 0.0, %v782
        %v784 = vpop.f32.mrb[0].mxu0
        %785 = vmatprep.mubr.bf16.mxu0 0
        %786 = vmatmul.mubr.bf16.gmra.mrb[0].mxu0 %v620
        %v787 = vpop.f32.mrb[0].mxu0
        %v788 = vadd.f32 0.0, %v787
        %v789 = vpop.f32.mrb[0].mxu0
        %v790 = vpop.f32.mrb[0].mxu0
        %v791 = vadd.f32 0.0, %v790
        %v792 = vpop.f32.mrb[0].mxu0
        %793 = vmatprep.mubr.bf16.mxu0 0
        %794 = vmatmul.mubr.bf16.gmra.mrb[0].mxu0 %v623
        %v795 = vpop.f32.mrb[0].mxu0
        %v796 = vadd.f32 0.0, %v795
        %v797 = vpop.f32.mrb[0].mxu0
        %v798 = vpop.f32.mrb[0].mxu0
        %v799 = vadd.f32 0.0, %v798
        %v800 = vpop.f32.mrb[0].mxu0
        %801 = vmatprep.mubr.bf16.mxu0 0
        %802 = vmatmul.mubr.bf16.gmra.mrb[0].mxu0 %v626
        %v803 = vpop.f32.mrb[0].mxu0
        %v804 = vadd.f32 0.0, %v803
        %v805 = vpop.f32.mrb[0].mxu0
        %v806 = vpop.f32.mrb[0].mxu0
        %v807 = vadd.f32 0.0, %v806
        %v808 = vpop.f32.mrb[0].mxu0
        %809 = vmatprep.mubr.bf16.mxu0 0
        %810 = vmatmul.mubr.bf16.gmra.mrb[0].mxu0 %v629
        %v811 = vpop.f32.mrb[0].mxu0
        %v812 = vadd.f32 0.0, %v811
        %v813 = vpop.f32.mrb[0].mxu0
        %v814 = vpop.f32.mrb[0].mxu0
        %v815 = vadd.f32 0.0, %v814
        %v816 = vpop.f32.mrb[0].mxu0
        %817 = vmatprep.mubr.bf16.mxu0 0
        %818 = vmatmul.mubr.bf16.gmra.mrb[0].mxu0 %v632
        %v819 = vpop.f32.mrb[0].mxu0
        %v820 = vadd.f32 0.0, %v819
        %v821 = vpop.f32.mrb[0].mxu0
        %v822 = vpop.f32.mrb[0].mxu0
        %v823 = vadd.f32 0.0, %v822
        %v824 = vpop.f32.mrb[0].mxu0
        %825 = vmatprep.mubr.bf16.mxu0 0
        %826 = vmatmul.mubr.bf16.gmra.mrb[0].mxu0 %v635
        %v827 = vpop.f32.mrb[0].mxu0
        %v828 = vadd.f32 0.0, %v827
        %v829 = vpop.f32.mrb[0].mxu0
        %v830 = vpop.f32.mrb[0].mxu0
        %v831 = vadd.f32 0.0, %v830
        %v832 = vpop.f32.mrb[0].mxu0
        %833 = vmatprep.mubr.bf16.mxu0 0
        %834 = vmatmul.mubr.bf16.gmra.mrb[0].mxu0 %v638
        %v835 = vpop.f32.mrb[0].mxu0
        %v836 = vadd.f32 0.0, %v835
        %v837 = vpop.f32.mrb[0].mxu0
        %v838 = vpop.f32.mrb[0].mxu0
        %v839 = vadd.f32 0.0, %v838
        %v840 = vpop.f32.mrb[0].mxu0
        %841 = vmatprep.mubr.bf16.mxu0 0
        %842 = vmatmul.mubr.bf16.gmra.mrb[0].mxu0 %v641
        %v843 = vpop.f32.mrb[0].mxu0
        %v844 = vadd.f32 0.0, %v843
        %v845 = vpop.f32.mrb[0].mxu0
        %v846 = vpop.f32.mrb[0].mxu0
        %v847 = vadd.f32 0.0, %v846
        %v848 = vpop.f32.mrb[0].mxu0
        %849 = vmatprep.mubr.bf16.mxu0 0
        %850 = vmatmul.mubr.bf16.gmra.mrb[0].mxu0 %v644
        %v851 = vpop.f32.mrb[0].mxu0
        %v852 = vadd.f32 0.0, %v851
        %v853 = vpop.f32.mrb[0].mxu0
        %v854 = vpop.f32.mrb[0].mxu0
        %v855 = vadd.f32 0.0, %v854
        %v856 = vpop.f32.mrb[0].mxu0
        %857 = vmatprep.mubr.bf16.mxu0 0
        %858 = vmatmul.mubr.bf16.gmra.mrb[0].mxu0 %v647
        %v859 = vpop.f32.mrb[0].mxu0
        %v860 = vadd.f32 0.0, %v859
        %v861 = vpop.f32.mrb[0].mxu0
        %v862 = vpop.f32.mrb[0].mxu0
        %v863 = vadd.f32 0.0, %v862
        %v864 = vpop.f32.mrb[0].mxu0
        %865 = vmatprep.mubr.bf16.mxu0 0
        %866 = vmatmul.mubr.bf16.gmra.mrb[0].mxu0 %v650
        %v867 = vpop.f32.mrb[0].mxu0
        %v868 = vadd.f32 0.0, %v867
        %v869 = vpop.f32.mrb[0].mxu0
        %v870 = vpop.f32.mrb[0].mxu0
        %v871 = vadd.f32 0.0, %v870
        %v872 = vpop.f32.mrb[0].mxu0
        %873 = vmatprep.mubr.bf16.mxu0 0
        %874 = vmatmul.mubr.bf16.gmra.mrb[0].mxu0 %v653
        %v875 = vpop.f32.mrb[0].mxu0
        %v876 = vadd.f32 0.0, %v875
        %v877 = vpop.f32.mrb[0].mxu0
        %v878 = vpop.f32.mrb[0].mxu0
        %v879 = vadd.f32 0.0, %v878
        %v880 = vpop.f32.mrb[0].mxu0
        %881 = vmatprep.mubr.bf16.mxu0 0
        %882 = vmatmul.mubr.bf16.gmra.mrb[0].mxu0 %v656
        %v883 = vpop.f32.mrb[0].mxu0
        %v884 = vadd.f32 0.0, %v883
        %v885 = vpop.f32.mrb[0].mxu0
        %v886 = vpop.f32.mrb[0].mxu0
        %v887 = vadd.f32 0.0, %v886
        %v888 = vpop.f32.mrb[0].mxu0
        %889 = vmatprep.mubr.bf16.mxu0 0
        %890 = vmatmul.mubr.bf16.gmra.mrb[0].mxu0 %v659
        %v891 = vpop.f32.mrb[0].mxu0
        %v892 = vadd.f32 0.0, %v891
        %v893 = vpop.f32.mrb[0].mxu0
        %v894 = vpop.f32.mrb[0].mxu0
        %v895 = vpop.f32.mrb[0].mxu0
        %896 = vdwg.mxu0
        %v897 = vmax.f32 %v700, 0.0
        %v898 = vmax.f32 %v703, 0.0
        %v899 = vmax.f32 %v708, 0.0
        %v900 = vmax.f32 %v711, 0.0
        %v901 = vmax.f32 %v716, 0.0
        %v902 = vmax.f32 %v719, 0.0
        %v903 = vmax.f32 %v724, 0.0
        %v904 = vmax.f32 %v727, 0.0
        %v905 = vmax.f32 %v732, 0.0
        %v906 = vmax.f32 %v735, 0.0
        %v907 = vmax.f32 %v740, 0.0
        %v908 = vmax.f32 %v743, 0.0
        %v909 = vmax.f32 %v748, 0.0
        %v910 = vmax.f32 %v751, 0.0
        %v911 = vmax.f32 %v756, 0.0
        %v912 = vmax.f32 %v759, 0.0
        %v913 = vmax.f32 %v764, 0.0
        %v914 = vmax.f32 %v767, 0.0
        %v915 = vmax.f32 %v772, 0.0
        %v916 = vmax.f32 %v775, 0.0
        %v917 = vmax.f32 %v780, 0.0
        %v918 = vmax.f32 %v783, 0.0
        %v919 = vmax.f32 %v788, 0.0
        %v920 = vmax.f32 %v791, 0.0
        %v921 = vmax.f32 %v796, 0.0
        %v922 = vmax.f32 %v799, 0.0
        %v923 = vmax.f32 %v804, 0.0
        %v924 = vmax.f32 %v807, 0.0
        %v925 = vmax.f32 %v812, 0.0
        %v926 = vmax.f32 %v815, 0.0
        %v927 = vmax.f32 %v820, 0.0
        %v928 = vmax.f32 %v823, 0.0
        %v929 = vmax.f32 %v828, 0.0
        %v930 = vmax.f32 %v831, 0.0
        %v931 = vmax.f32 %v836, 0.0
        %v932 = vmax.f32 %v839, 0.0
        %v933 = vmax.f32 %v844, 0.0
        %v934 = vmax.f32 %v847, 0.0
        %v935 = vmax.f32 %v852, 0.0
        %v936 = vmax.f32 %v855, 0.0
        %v937 = vmax.f32 %v860, 0.0
        %v938 = vmax.f32 %v863, 0.0
        %v939 = vmax.f32 %v868, 0.0
        %v940 = vmax.f32 %v871, 0.0
        %v941 = vmax.f32 %v876, 0.0
        %v942 = vmax.f32 %v879, 0.0
        %v943 = vmax.f32 %v884, 0.0
        %v944 = vmax.f32 %v887, 0.0
        %v945 = vmax.f32 %v892, 0.0
        %v946 = vld [vmem:[%s3] sm:$0xff]
        %v947 = vld [vmem:[%s3 + $0x8] sm:$0xff]
        %v948 = vpack.c.bf16 %v898, %v897
        %v949 = vpack.c.bf16 %v900, %v899
        %v950 = vpack.c.bf16 %v902, %v901
        %v951 = vpack.c.bf16 %v904, %v903
        %v952 = vpack.c.bf16 %v906, %v905
        %v953 = vpack.c.bf16 %v908, %v907
        %v954 = vpack.c.bf16 %v910, %v909
        %v955 = vpack.c.bf16 %v912, %v911
        %v956 = vpack.c.bf16 %v914, %v913
        %v957 = vpack.c.bf16 %v916, %v915
        %v958 = vpack.c.bf16 %v918, %v917
        %v959 = vpack.c.bf16 %v920, %v919
        %v960 = vpack.c.bf16 %v922, %v921
        %v961 = vpack.c.bf16 %v924, %v923
        %v962 = vpack.c.bf16 %v926, %v925
        %v963 = vpack.c.bf16 %v928, %v927
        %v964 = vpack.c.bf16 %v930, %v929
        %v965 = vpack.c.bf16 %v932, %v931
        %v966 = vpack.c.bf16 %v934, %v933
        %v967 = vpack.c.bf16 %v936, %v935
        %v968 = vpack.c.bf16 %v938, %v937
        %v969 = vpack.c.bf16 %v940, %v939
        %v970 = vpack.c.bf16 %v942, %v941
        %v971 = vpack.c.bf16 %v944, %v943
        %v972 = vpack.c.bf16 %v945, %v945
        %v975 = vunpack.c.l.b16 %v946
        %v976 = vunpack.c.h.b16 %v946
        %v977 = vunpack.c.l.b16 %v947
        %v978 = vunpack.c.h.b16 %v947
        %v979 = vpack.c.b16 %v975, %v975
        %v980 = vpack.c.b16 %v976, %v976
        %v981 = vpack.c.b16 %v977, %v977
        %v982 = vpack.c.b16 %v978, %v978
        %vm986 = vcmask 64512
        %v988 = vsel %vm986, %v982, 0
        %vm990 = vcmask 1043456
        %v992 = vsel %vm990, %v972, 0
        %994 = vmatprep.subr.bf16.mxu0 0
        %995 = vmatpush1.bf16.msra.mxu0 %v948
        %996 = vmatprep.subr.bf16.mxu0 0
        %997 = vmatpush1.bf16.msra.mxu0 %v949
        %998 = vmatprep.subr.bf16.mxu0 0
        %999 = vmatpush1.bf16.msra.mxu0 %v950
        %1000 = vmatprep.subr.bf16.mxu0 0
        %1001 = vmatpush1.bf16.msra.mxu0 %v951
        %1002 = vmatprep.subr.bf16.mxu0 0
        %1003 = vmatpush1.bf16.msra.mxu0 %v952
        %1004 = vmatprep.subr.bf16.mxu0 0
        %1005 = vmatpush1.bf16.msra.mxu0 %v953
        %1006 = vmatprep.subr.bf16.mxu0 0
        %1007 = vmatpush1.bf16.msra.mxu0 %v954
        %1008 = vmatprep.subr.bf16.mxu0 0
        %1009 = vmatpush1.bf16.msra.mxu0 %v955
        %1010 = vmatprep.subr.bf16.mxu0 0
        %1011 = vmatpush1.bf16.msra.mxu0 %v956
        %1012 = vmatprep.subr.bf16.mxu0 0
        %1013 = vmatpush1.bf16.msra.mxu0 %v957
        %1014 = vmatprep.subr.bf16.mxu0 0
        %1015 = vmatpush1.bf16.msra.mxu0 %v958
        %1016 = vmatprep.subr.bf16.mxu0 0
        %1017 = vmatpush1.bf16.msra.mxu0 %v959
        %1018 = vmatprep.subr.bf16.mxu0 0
        %1019 = vmatpush1.bf16.msra.mxu0 %v960
        %1020 = vmatprep.subr.bf16.mxu0 0
        %1021 = vmatpush1.bf16.msra.mxu0 %v961
        %1022 = vmatprep.subr.bf16.mxu0 0
        %1023 = vmatpush1.bf16.msra.mxu0 %v962
        %1024 = vmatprep.subr.bf16.mxu0 0
        %1025 = vmatpush1.bf16.msra.mxu0 %v963
        %1026 = vmatprep.mubr.bf16.mxu0 %v980
        %1027 = vmatmul.mubr.bf16.gmra.mrb[0].mxu0 %v979
        %v1028 = vpop.f32.mrb[0].mxu0
        %v1029 = vadd.f32 0.0, %v1028
        %v1030 = vpop.f32.mrb[0].mxu0
        %v1031 = vpop.f32.mrb[0].mxu0
        %v1032 = vpop.f32.mrb[0].mxu0
        %1033 = vdwg.mxu0
        %1034 = vmatprep.subr.bf16.mxu0 0
        %1035 = vmatpush1.bf16.msra.mxu0 %v964
        %1036 = vmatprep.subr.bf16.mxu0 0
        %1037 = vmatpush1.bf16.msra.mxu0 %v965
        %1038 = vmatprep.subr.bf16.mxu0 0
        %1039 = vmatpush1.bf16.msra.mxu0 %v966
        %1040 = vmatprep.subr.bf16.mxu0 0
        %1041 = vmatpush1.bf16.msra.mxu0 %v967
        %1042 = vmatprep.subr.bf16.mxu0 0
        %1043 = vmatpush1.bf16.msra.mxu0 %v968
        %1044 = vmatprep.subr.bf16.mxu0 0
        %1045 = vmatpush1.bf16.msra.mxu0 %v969
        %1046 = vmatprep.subr.bf16.mxu0 0
        %1047 = vmatpush1.bf16.msra.mxu0 %v970
        %1048 = vmatprep.subr.bf16.mxu0 0
        %1049 = vmatpush1.bf16.msra.mxu0 %v971
        %1050 = vmatprep.subr.bf16.mxu0 0
        %1051 = vmatpush1.bf16.msra.mxu0 %v992
        %1052 = vmatprep.subr.bf16.mxu0 0
        %1053 = vmatpush1.bf16.msra.mxu0 0
        %1054 = vmatprep.subr.bf16.mxu0 0
        %1055 = vmatpush1.bf16.msra.mxu0 0
        %1056 = vmatprep.subr.bf16.mxu0 0
        %1057 = vmatpush1.bf16.msra.mxu0 0
        %1058 = vmatprep.subr.bf16.mxu0 0
        %1059 = vmatpush1.bf16.msra.mxu0 0
        %1060 = vmatprep.subr.bf16.mxu0 0
        %1061 = vmatpush1.bf16.msra.mxu0 0
        %1062 = vmatprep.subr.bf16.mxu0 0
        %1063 = vmatpush1.bf16.msra.mxu0 0
        %1064 = vmatprep.subr.bf16.mxu0 0
        %1065 = vmatpush1.bf16.msra.mxu0 0
        %1066 = vmatprep.mubr.bf16.mxu0 %v988
        %1067 = vmatmul.mubr.bf16.gmra.mrb[0].mxu0 %v981
        %v1068 = vpop.f32.mrb[0].mxu0
        %v1069 = vadd.f32 %v1029, %v1068
        %v1070 = vpop.f32.mrb[0].mxu0
        %v1071 = vpop.f32.mrb[0].mxu0
        %v1072 = vpop.f32.mrb[0].mxu0
        %1073 = vdwg.mxu0
        %v1074 = vpack.c.bf16 %v1069, %v1069
        %v1075 = vlaneseq
        %v1076 = vshrl.u32 %v1075, 7
        %v1077 = vsub.s32 0, %v1076
        %v1078 = vrot.slane %v310, %v1077
        %v1081 = vunpack.c.l.b16 %v299
        %v1082 = vunpack.c.l.b16 %v300
        %v1083 = vpack.c.b16 %v1082, %v1081
        %vm1085 = vcmask 130048
        %v1087 = vsel %vm1085, %v1074, 0
        %1089 = vmatprep.subr.bf16.mxu0 0
        %1090 = vmatpush1.bf16.msra.mxu0 %v1083
        %1091 = vmatprep.subr.bf16.mxu0 0
        %1092 = vmatpush1.bf16.msra.mxu0 0
        %1093 = vmatprep.subr.bf16.mxu0 0
        %1094 = vmatpush1.bf16.msra.mxu0 0
        %1095 = vmatprep.subr.bf16.mxu0 0
        %1096 = vmatpush1.bf16.msra.mxu0 0
        %1097 = vmatprep.subr.bf16.mxu0 0
        %1098 = vmatpush1.bf16.msra.mxu0 0
        %1099 = vmatprep.subr.bf16.mxu0 0
        %1100 = vmatpush1.bf16.msra.mxu0 0
        %1101 = vmatprep.subr.bf16.mxu0 0
        %1102 = vmatpush1.bf16.msra.mxu0 0
        %1103 = vmatprep.subr.bf16.mxu0 0
        %1104 = vmatpush1.bf16.msra.mxu0 0
        %1105 = vmatprep.subr.bf16.mxu0 0
        %1106 = vmatpush1.bf16.msra.mxu0 0
        %1107 = vmatprep.subr.bf16.mxu0 0
        %1108 = vmatpush1.bf16.msra.mxu0 0
        %1109 = vmatprep.subr.bf16.mxu0 0
        %1110 = vmatpush1.bf16.msra.mxu0 0
        %1111 = vmatprep.subr.bf16.mxu0 0
        %1112 = vmatpush1.bf16.msra.mxu0 0
        %1113 = vmatprep.subr.bf16.mxu0 0
        %1114 = vmatpush1.bf16.msra.mxu0 0
        %1115 = vmatprep.subr.bf16.mxu0 0
        %1116 = vmatpush1.bf16.msra.mxu0 0
        %1117 = vmatprep.subr.bf16.mxu0 0
        %1118 = vmatpush1.bf16.msra.mxu0 0
        %1119 = vmatprep.subr.bf16.mxu0 0
        %1120 = vmatpush1.bf16.msra.mxu0 0
        %1121 = vmatprep.mubr.bf16.mxu0 0
        %1122 = vmatmul.mubr.bf16.gmra.mrb[0].mxu0 %v1087
        %v1123 = vpop.f32.mrb[0].mxu0
        %v1124 = vadd.f32 %v1078, %v1123
        %v1125 = vpop.f32.mrb[0].mxu0
        %v1126 = vpop.f32.mrb[0].mxu0
        %v1127 = vpop.f32.mrb[0].mxu0
        %1128 = vdwg.mxu0
        %v1129 = vmax.f32 %v1124, 0.0
        %v1130 = vpack.c.bf16 %v397, %v397
        %v1131 = vpack.c.bf16 %v1129, %v1129
        %v1136 = vunpack.c.l.b16 %v305
        %v1137 = vunpack.c.l.b16 %v306
        %v1138 = vunpack.c.l.b16 %v307
        %v1139 = vunpack.c.l.b16 %v308
        %v1140 = vpack.c.b16 %v1137, %v1136
        %v1141 = vpack.c.b16 %v1139, %v1138
        %v1145 = vsel %vm314, %v1131, 0
        %1147 = vmatprep.subr.bf16.mxu0 0
        %1148 = vmatpush1.bf16.msra.mxu0 %v1140
        %1149 = vmatprep.subr.bf16.mxu0 0
        %1150 = vmatpush1.bf16.msra.mxu0 %v1141
        %1151 = vmatprep.subr.bf16.mxu0 0
        %1152 = vmatpush1.bf16.msra.mxu0 0
        %1153 = vmatprep.subr.bf16.mxu0 0
        %1154 = vmatpush1.bf16.msra.mxu0 0
        %1155 = vmatprep.subr.bf16.mxu0 0
        %1156 = vmatpush1.bf16.msra.mxu0 0
        %1157 = vmatprep.subr.bf16.mxu0 0
        %1158 = vmatpush1.bf16.msra.mxu0 0
        %1159 = vmatprep.subr.bf16.mxu0 0
        %1160 = vmatpush1.bf16.msra.mxu0 0
        %1161 = vmatprep.subr.bf16.mxu0 0
        %1162 = vmatpush1.bf16.msra.mxu0 0
        %1163 = vmatprep.subr.bf16.mxu0 0
        %1164 = vmatpush1.bf16.msra.mxu0 0
        %1165 = vmatprep.subr.bf16.mxu0 0
        %1166 = vmatpush1.bf16.msra.mxu0 0
        %1167 = vmatprep.subr.bf16.mxu0 0
        %1168 = vmatpush1.bf16.msra.mxu0 0
        %1169 = vmatprep.subr.bf16.mxu0 0
        %1170 = vmatpush1.bf16.msra.mxu0 0
        %1171 = vmatprep.subr.bf16.mxu0 0
        %1172 = vmatpush1.bf16.msra.mxu0 0
        %1173 = vmatprep.subr.bf16.mxu0 0
        %1174 = vmatpush1.bf16.msra.mxu0 0
        %1175 = vmatprep.subr.bf16.mxu0 0
        %1176 = vmatpush1.bf16.msra.mxu0 0
        %1177 = vmatprep.subr.bf16.mxu0 0
        %1178 = vmatpush1.bf16.msra.mxu0 0
        %1179 = vmatprep.mubr.bf16.mxu0 0
        %1180 = vmatmul.mubr.bf16.gmra.mrb[0].mxu0 %v1145
        %v1181 = vpop.f32.mrb[0].mxu0
        %v1182 = vadd.f32 0.0, %v1181
        %v1183 = vpop.f32.mrb[0].mxu0
        %v1184 = vpop.f32.mrb[0].mxu0
        %v1185 = vpop.f32.mrb[0].mxu0
        %1186 = vdwg.mxu0
        %v1191 = vunpack.c.l.b16 %v301
        %v1192 = vunpack.c.l.b16 %v302
        %v1193 = vunpack.c.l.b16 %v303
        %v1194 = vunpack.c.l.b16 %v304
        %v1195 = vpack.c.b16 %v1192, %v1191
        %v1196 = vpack.c.b16 %v1194, %v1193
        %v1200 = vsel %vm314, %v1130, 0
        %1202 = vmatprep.subr.bf16.mxu0 0
        %1203 = vmatpush1.bf16.msra.mxu0 %v1195
        %1204 = vmatprep.subr.bf16.mxu0 0
        %1205 = vmatpush1.bf16.msra.mxu0 %v1196
        %1206 = vmatprep.subr.bf16.mxu0 0
        %1207 = vmatpush1.bf16.msra.mxu0 0
        %1208 = vmatprep.subr.bf16.mxu0 0
        %1209 = vmatpush1.bf16.msra.mxu0 0
        %1210 = vmatprep.subr.bf16.mxu0 0
        %1211 = vmatpush1.bf16.msra.mxu0 0
        %1212 = vmatprep.subr.bf16.mxu0 0
        %1213 = vmatpush1.bf16.msra.mxu0 0
        %1214 = vmatprep.subr.bf16.mxu0 0
        %1215 = vmatpush1.bf16.msra.mxu0 0
        %1216 = vmatprep.subr.bf16.mxu0 0
        %1217 = vmatpush1.bf16.msra.mxu0 0
        %1218 = vmatprep.subr.bf16.mxu0 0
        %1219 = vmatpush1.bf16.msra.mxu0 0
        %1220 = vmatprep.subr.bf16.mxu0 0
        %1221 = vmatpush1.bf16.msra.mxu0 0
        %1222 = vmatprep.subr.bf16.mxu0 0
        %1223 = vmatpush1.bf16.msra.mxu0 0
        %1224 = vmatprep.subr.bf16.mxu0 0
        %1225 = vmatpush1.bf16.msra.mxu0 0
        %1226 = vmatprep.subr.bf16.mxu0 0
        %1227 = vmatpush1.bf16.msra.mxu0 0
        %1228 = vmatprep.subr.bf16.mxu0 0
        %1229 = vmatpush1.bf16.msra.mxu0 0
        %1230 = vmatprep.subr.bf16.mxu0 0
        %1231 = vmatpush1.bf16.msra.mxu0 0
        %1232 = vmatprep.subr.bf16.mxu0 0
        %1233 = vmatpush1.bf16.msra.mxu0 0
        %1234 = vmatprep.mubr.bf16.mxu0 0
        %1235 = vmatmul.mubr.bf16.gmra.mrb[0].mxu0 %v1200
        %v1236 = vpop.f32.mrb[0].mxu0
        %v1237 = vadd.f32 %v1182, %v1236
        %v1238 = vpop.f32.mrb[0].mxu0
        %v1239 = vpop.f32.mrb[0].mxu0
        %v1240 = vpop.f32.mrb[0].mxu0
        %1241 = vdwg.mxu0
        %v1242 = vlaneseq
        %v1243 = vshrl.u32 %v1242, 7
        %v1244 = vsub.s32 0, %v1243
        %v1245 = vrot.slane %v311, %v1244
        %v1246 = vadd.f32 %v1237, %v1245
        %v1247 = vpack.c.bf16 %v1246, %v1246
        %v1248 = vld [vmem:[%s5] sm:$0xf]
        %v1249 = vld [vmem:[%s5 + $0x4] sm:$0xf]
        %v1250 = vld [vmem:[%s5 + $0x8] sm:$0xf]
        %v1251 = vld [vmem:[%s5 + $0xc] sm:$0xf]
        %v1252 = vlaneseq
        %v1253 = vshrl.u32 %v1252, 7
        %v1254 = vsub.s32 0, %v1253
        %v1255 = vrot.slane %v312, %v1254
        %v1260 = vunpack.c.l.b16 %v1248
        %v1261 = vunpack.c.l.b16 %v1249
        %v1262 = vunpack.c.l.b16 %v1250
        %v1263 = vunpack.c.l.b16 %v1251
        %v1264 = vpack.c.b16 %v1261, %v1260
        %v1265 = vpack.c.b16 %v1263, %v1262
        %v1269 = vsel %vm314, %v1247, 0
        %1271 = vmatprep.subr.bf16.mxu0 0
        %1272 = vmatpush1.bf16.msra.mxu0 %v1264
        %1273 = vmatprep.subr.bf16.mxu0 0
        %1274 = vmatpush1.bf16.msra.mxu0 %v1265
        %1275 = vmatprep.subr.bf16.mxu0 0
        %1276 = vmatpush1.bf16.msra.mxu0 0
        %1277 = vmatprep.subr.bf16.mxu0 0
        %1278 = vmatpush1.bf16.msra.mxu0 0
        %1279 = vmatprep.subr.bf16.mxu0 0
        %1280 = vmatpush1.bf16.msra.mxu0 0
        %1281 = vmatprep.subr.bf16.mxu0 0
        %1282 = vmatpush1.bf16.msra.mxu0 0
        %1283 = vmatprep.subr.bf16.mxu0 0
        %1284 = vmatpush1.bf16.msra.mxu0 0
        %1285 = vmatprep.subr.bf16.mxu0 0
        %1286 = vmatpush1.bf16.msra.mxu0 0
        %1287 = vmatprep.subr.bf16.mxu0 0
        %1288 = vmatpush1.bf16.msra.mxu0 0
        %1289 = vmatprep.subr.bf16.mxu0 0
        %1290 = vmatpush1.bf16.msra.mxu0 0
        %1291 = vmatprep.subr.bf16.mxu0 0
        %1292 = vmatpush1.bf16.msra.mxu0 0
        %1293 = vmatprep.subr.bf16.mxu0 0
        %1294 = vmatpush1.bf16.msra.mxu0 0
        %1295 = vmatprep.subr.bf16.mxu0 0
        %1296 = vmatpush1.bf16.msra.mxu0 0
        %1297 = vmatprep.subr.bf16.mxu0 0
        %1298 = vmatpush1.bf16.msra.mxu0 0
        %1299 = vmatprep.subr.bf16.mxu0 0
        %1300 = vmatpush1.bf16.msra.mxu0 0
        %1301 = vmatprep.subr.bf16.mxu0 0
        %1302 = vmatpush1.bf16.msra.mxu0 0
        %1303 = vmatprep.mubr.bf16.mxu0 0
        %1304 = vmatmul.mubr.bf16.gmra.mrb[0].mxu0 %v1269
        %v1305 = vpop.f32.mrb[0].mxu0
        %v1306 = vadd.f32 %v1255, %v1305
        %v1307 = vpop.f32.mrb[0].mxu0
        %v1308 = vpop.f32.mrb[0].mxu0
        %v1309 = vpop.f32.mrb[0].mxu0
        %1310 = vdwg.mxu0
        %1311 = vmax.xlane.f32.xlu0 %v1306
        %v1312 = vpop.xlane.xlu0 %1311
        %v1313 = vlaneseq
        %v1314 = vand.u32 %v1313, 127
        %vm1315 = vcmp.ge.f32.partialorder %v1306, %v1312
        %v1316 = vsel %vm1315, %v1314, 128
        %v1317 = vand.u32 %v1316, 65535
        %v1318 = vshra.s32 %v1316, 16
        %v1319 = vcvt.s32.f32 %v1317
        %v1320 = vcvt.s32.f32 %v1318
        %1321 = vmin.xlane.f32.xlu0 %v1320
        %v1322 = vpop.xlane.xlu0 %1321
        %vm1323 = vcmp.eq.f32.partialorder %v1320, %v1322
        %v1324 = vsel %vm1323, %v1319, inf
        %1325 = vmin.xlane.f32.xlu0 %v1324
        %v1326 = vpop.xlane.xlu0 %1325
        %v1327 = vcvt.f32.s32 %v1326
        %v1328 = vcvt.f32.s32 %v1322
        %v1329 = vshll.u32 %v1328, 16
        %v1330 = vadd.s32 %v1329, %v1327
        %1331 = vst [vmem:[%s284] sm:$0xff] %v1330
        %s1332 = sand.u32 %s186, 1
        %s1333 = scalar_lea.sflag [#allocation3], %s1332
        %s1334 = sand.u32 %s186, 1
        %s1335 = smul.addr %s1334, 8
        %s1336 = scalar_lea.vmem [#allocation2], %s1335
        // Predicated region
        $region49: #{_fused_forward.1} parent=47 // pred_check
          %p1337 = pneg %p196
        $region50: #{_fused_forward.1} parent=47 // pred_check_branch
          %1339 = sbr.rel (%p1337) target = $region52
        $region51: #{_fused_forward.1} parent=47 // pred_region
          %s1341 = ssub.s32 128, 128
          %1342 = vsyncadd %s1333, %s1341
          %s1343 = smul.addr %s21, 128
          %s1344 = scalar_lea.hbm %s7, %s1343
          %s1346 = sshll.u32 %s1336, 4
          %s1347 = int_to_ptr.vmem [resolvable:$true] %s1346
          %1349 = dma.vmem_to_hbm [thread:$0]  %s1347, 128, %s1344, %s1333
        $region52: #{_fused_forward.1} parent=47 // pred_fallthru
          _
      $region48: #{_fused_forward.1} parent=5 // pred_fallthru
        _
      %p1350 = scmp.le.s32.totalorder 2, %s16
      // Predicated region
      $region53: #{_fused_forward.1} parent=5 // pred_check
        %p1351 = pneg %p1350
      $region54: #{_fused_forward.1} parent=5 // pred_check_branch
        %1353 = sbr.rel (%p1351) target = $region56
      $region55: #{_fused_forward.1} parent=5 // pred_region
        %s1354 = ssub.s32 %s16, 2
        // Predicated region
        $region57: #{_fused_forward.1} parent=55 // pred_check
          %p1355 = pneg %p202
        $region58: #{_fused_forward.1} parent=55 // pred_check_branch
          %1357 = sbr.rel (%p1355) target = $region60
        $region59: #{_fused_forward.1} parent=55 // pred_region
          %s1358 = sand.u32 %s187, 1
          %s1359 = scalar_lea.sflag [#allocation3], %s1358
          %s1360 = sand.u32 %s187, 1
          %s1361 = smul.addr %s1360, 8
          %s1362 = scalar_lea.vmem [#allocation2], %s1361
          %1363 = dma.done %s1359, 128
        $region60: #{_fused_forward.1} parent=55 // pred_fallthru
          _
      $region56: #{_fused_forward.1} parent=5 // pred_fallthru
        _
    $region6: #{_fused_forward.1} parent=1 // loop_footer
      %s20 = sadd.s32 1, %s16
    $region7: #{_fused_forward.1} parent=1 // loop_footer_branch
      %15 = sbr.rel target = $region3
    $region8: #{_fused_forward.1} parent=1 // loop_exit
      _
    %1364 = vsyncpa [#allocation3], 1
    %s1365 = scalar_lea.sflag [#allocation3], 1
    %1366 = vsyncpa %s1365, 1

</llo_original>
